<compile_context>
chip_gen: v5e
topology: v5e:2x2
jax: 0.10.0
libtpu: 0.0.40
codegen_flags: <defaults>
</compile_context>

<pallas_src>
import functools

import jax
import jax.numpy as jnp
from jax.experimental import pallas as pl
from jax.experimental.pallas import tpu as pltpu

_LN_EPS = 1e-5  # torch.nn.LayerNorm default


def _mixer_layer_kernel(x_ref,
                        tg_ref, tbeta_ref, tw1_ref, tb1_ref, tw2_ref, tb2_ref,
                        cg_ref, cbeta_ref, cw1_ref, cb1_ref, cw2_ref, cb2_ref,
                        o_ref):
    """Fused Mixer layer on a (TB, S, C) batch block, all in (S, C) layout."""
    x = x_ref[...].astype(jnp.float32)                        # (TB, S, C)
    tb, s, c = x.shape

    # ----- token mixing: LN over tokens, then W2t @ gelu(W1t @ xn) ----------
    # Single-pass LN statistics: var = E[x^2] - E[x]^2.
    mean = jnp.mean(x, axis=1, keepdims=True)                 # (TB, 1, C)
    var = jnp.mean(x * x, axis=1, keepdims=True) - mean * mean
    xn = (x - mean) * jax.lax.rsqrt(var + _LN_EPS)
    xn = xn * tg_ref[...] + tbeta_ref[...]                    # (S, 1) broadcast
    xn = xn.astype(jnp.bfloat16)

    w1, b1 = tw1_ref[...], tb1_ref[...]
    w2, b2 = tw2_ref[...], tb2_ref[...]
    toks = []
    for b in range(tb):                                       # static unroll, TB small
        h = jnp.dot(w1, xn[b], preferred_element_type=jnp.float32) + b1
        h = jax.nn.gelu(h, approximate=True)                  # tanh GELU -> EUP
        toks.append(jnp.dot(w2, h.astype(jnp.bfloat16),
                            preferred_element_type=jnp.float32) + b2)
    x1 = jnp.stack(toks, axis=0) + x                          # residual, (TB, S, C)

    # ----- channel mixing on the flattened (TB*S, C) slab -------------------
    y = x1.reshape(tb * s, c)
    m2 = jnp.mean(y, axis=-1, keepdims=True)                  # (TB*S, 1)
    v2 = jnp.mean(y * y, axis=-1, keepdims=True) - m2 * m2
    yn = (y - m2) * jax.lax.rsqrt(v2 + _LN_EPS)
    yn = yn * cg_ref[...] + cbeta_ref[...]                    # (1, C) broadcast

    h2 = jnp.dot(yn.astype(jnp.bfloat16), cw1_ref[...],
                 preferred_element_type=jnp.float32) + cb1_ref[...]
    h2 = jax.nn.gelu(h2, approximate=True)
    out = jnp.dot(h2.astype(jnp.bfloat16), cw2_ref[...],
                  preferred_element_type=jnp.float32) + cb2_ref[...]

    o_ref[...] = (out + y).reshape(tb, s, c).astype(o_ref.dtype)


def _const_spec(shape, single_buffer):
    """BlockSpec with a constant index_map (weights/biases, DMA'd once).

    When single_buffer=True, request a single pipeline buffer: the block never
    changes across grid steps, so the default double buffer only wastes VMEM
    (matters most on v7x's 64 MiB VMEM).  Falls back cleanly if this JAX build
    does not accept pipeline_mode.
    """
    index_map = lambda b: (0,) * len(shape)
    if single_buffer and hasattr(pl, "Buffered"):
        try:
            return pl.BlockSpec(shape, index_map, pipeline_mode=pl.Buffered(1))
        except (TypeError, AttributeError):
            pass
    return pl.BlockSpec(shape, index_map)


def _pick_batch_block(B, S, C, budget_bytes=40 * 1024 * 1024):
    """Largest batch block (<=8) that (a) fits a v7x-safe per-step VMEM budget
    and (b) keeps >=2 grid steps so the 'parallel' axis can actually shard
    across v7x's two TensorCores."""
    weight_bytes = 2 * (S * S + C * C) * 2 + 8 * (S + C) * 4      # bf16 weights + small
    per_elem = S * C * 4 * (2 * 2 + 10)   # dbl-buffered in/out + ~10 live f32 temps
    avail = max(budget_bytes - weight_bytes, per_elem)
    cap = int(max(1, min(8, avail // per_elem)))
    best = 1
    for tb in range(1, cap + 1):
        if B % tb == 0 and B // tb >= 2:
            best = tb
    return best


def mixer_layer_pallas(x, params, single_buffer_weights=True):
    """x: (B, S, C). Returns channel_mixing_MLP(token_mixing_MLP(x))."""
    B, S, C = x.shape
    f32, bf16 = jnp.float32, jnp.bfloat16

    # LN params / biases stay f32; matmul weights are cast to bf16 once here
    # (halves weight DMA + VMEM footprint, full MXU rate).
    tok_gamma = params["tok_gamma"].astype(f32).reshape(S, 1)
    tok_beta = params["tok_beta"].astype(f32).reshape(S, 1)
    tok_w1 = params["tok_w1"].astype(bf16)                 # (S, S), used as W @ x
    tok_b1 = params["tok_b1"].astype(f32).reshape(S, 1)
    tok_w2 = params["tok_w2"].astype(bf16)
    tok_b2 = params["tok_b2"].astype(f32).reshape(S, 1)

    ch_gamma = params["ch_gamma"].astype(f32).reshape(1, C)
    ch_beta = params["ch_beta"].astype(f32).reshape(1, C)
    ch_w1 = params["ch_w1"].T.astype(bf16)                 # (in, out) for y @ W
    ch_b1 = params["ch_b1"].astype(f32).reshape(1, C)
    ch_w2 = params["ch_w2"].T.astype(bf16)
    ch_b2 = params["ch_b2"].astype(f32).reshape(1, C)

    TB = _pick_batch_block(B, S, C)
    grid = (B // TB,)

    # VMEM budget: double-buffered x in/out blocks + live f32 intermediates +
    # both weight sets (counted double-buffered for a conservative estimate).
    act_block = TB * S * C * 4
    weight_bytes = 2 * (S * S + C * C) * 2
    small_bytes = 8 * (S + C) * 4
    vmem_need = (2 * 2) * act_block + 10 * act_block + 2 * weight_bytes + small_bytes
    vmem_limit = int(min(max(vmem_need * 3 // 2, 32 * 1024 * 1024),
                         64 * 1024 * 1024))               # cap: v7x physical VMEM

    flops = int(4 * B * S * C * (S + C))                  # 4 matmuls per element
    bytes_accessed = int(2 * B * S * C * x.dtype.itemsize  # activation in + out
                         + weight_bytes + small_bytes)
    cost = pl.CostEstimate(flops=flops,
                           transcendentals=int(2 * B * S * C),
                           bytes_accessed=bytes_accessed)

    cs = lambda shape: _const_spec(shape, single_buffer_weights)

    # NOTE: at production Mixer sizes, pad C to a multiple of 128 and S to the
    # MXU width (masking padded rows out of the token-LN statistics) in the
    # wrapper for full lane density / MXU utilization; the tiny demo shapes
    # below are inherently sub-vreg.
    return pl.pallas_call(
        _mixer_layer_kernel,
        out_shape=jax.ShapeDtypeStruct((B, S, C), x.dtype),
        grid=grid,
        in_specs=[
            pl.BlockSpec((TB, S, C), lambda b: (b, 0, 0)),  # x (batch block)
            cs((S, 1)),                                     # tok LN gamma
            cs((S, 1)),                                     # tok LN beta
            cs((S, S)),                                     # tok W1 (bf16)
            cs((S, 1)),                                     # tok b1
            cs((S, S)),                                     # tok W2 (bf16)
            cs((S, 1)),                                     # tok b2
            cs((1, C)),                                     # ch LN gamma
            cs((1, C)),                                     # ch LN beta
            cs((C, C)),                                     # ch W1.T (bf16)
            cs((1, C)),                                     # ch b1
            cs((C, C)),                                     # ch W2.T (bf16)
            cs((1, C)),                                     # ch b2
        ],
        out_specs=pl.BlockSpec((TB, S, C), lambda b: (b, 0, 0)),
        compiler_params=pltpu.CompilerParams(
            dimension_semantics=("parallel",),
            vmem_limit_bytes=vmem_limit),
        cost_estimate=cost,
    )(x, tok_gamma, tok_beta, tok_w1, tok_b1, tok_w2, tok_b2,
      ch_gamma, ch_beta, ch_w1, ch_b1, ch_w2, ch_b2)


def init_mixer_params(key, num_tokens, num_channels, dtype=jnp.float32):
    """Deterministic synthetic parameters mirroring the PyTorch module's shapes
    (Linear weights are (out, in), like torch). All keys are distinct."""
    ks = jax.random.split(key, 12)
    st = 1.0 / jnp.sqrt(jnp.float32(num_tokens))
    sc = 1.0 / jnp.sqrt(jnp.float32(num_channels))
    return {
        # token_mixing_MLP: LayerNorm(S) + Linear(S,S) + GELU + Linear(S,S)
        "tok_gamma": 1.0 + 0.1 * jax.random.normal(ks[0], (num_tokens,), dtype),
        "tok_beta": 0.1 * jax.random.normal(ks[1], (num_tokens,), dtype),
        "tok_w1": jax.random.normal(ks[2], (num_tokens, num_tokens), dtype) * st,
        "tok_b1": jax.random.normal(ks[3], (num_tokens,), dtype) * st,
        "tok_w2": jax.random.normal(ks[4], (num_tokens, num_tokens), dtype) * st,
        "tok_b2": jax.random.normal(ks[5], (num_tokens,), dtype) * st,
        # channel_mixing_MLP: LayerNorm(C) + Linear(C,C) + GELU + Linear(C,C)
        "ch_gamma": 1.0 + 0.1 * jax.random.normal(ks[6], (num_channels,), dtype),
        "ch_beta": 0.1 * jax.random.normal(ks[7], (num_channels,), dtype),
        "ch_w1": jax.random.normal(ks[8], (num_channels, num_channels), dtype) * sc,
        "ch_b1": jax.random.normal(ks[9], (num_channels,), dtype) * sc,
        "ch_w2": jax.random.normal(ks[10], (num_channels, num_channels), dtype) * sc,
        "ch_b2": jax.random.normal(ks[11], (num_channels,), dtype) * sc,
    }


@functools.partial(jax.jit, static_argnums=(2,))
def mixer_layer(x, params, single_buffer_weights=True):
    """Forward of Mixer_Layer: token_mixing_MLP followed by channel_mixing_MLP."""
    return mixer_layer_pallas(x, params, single_buffer_weights)


def _reference(x, p):
    """Pure-JAX f32 reference mirroring the PyTorch module exactly (erf GELU)."""
    def ln(v, g, b):  # LayerNorm over last axis, biased variance (torch)
        m = jnp.mean(v, axis=-1, keepdims=True)
        s = jnp.mean(jnp.square(v - m), axis=-1, keepdims=True)
        return (v - m) * jax.lax.rsqrt(s + _LN_EPS) * g + b

    def torch_mlp(v, w1, b1, w2, b2):  # torch Linear: v @ W.T + b
        h = jax.nn.gelu(v @ w1.T + b1, approximate=False)
        return h @ w2.T + b2

    # token mixing: transpose -> LN(S) -> MLP(S) -> transpose back -> +x
    xt = jnp.transpose(x, (0, 2, 1))
    tok = torch_mlp(ln(xt, p["tok_gamma"], p["tok_beta"]),
                    p["tok_w1"], p["tok_b1"], p["tok_w2"], p["tok_b2"])
    x1 = jnp.transpose(tok, (0, 2, 1)) + x
    # channel mixing: LN(C) -> MLP(C) -> +x1
    ch = torch_mlp(ln(x1, p["ch_gamma"], p["ch_beta"]),
                   p["ch_w1"], p["ch_b1"], p["ch_w2"], p["ch_b2"])
    return ch + x1


if __name__ == "__main__":
    B, S, C = 4, 8, 32   # batch, tokens, channels  (input_size = (B, S, C))
    key = jax.random.PRNGKey(0)
    kx, kp = jax.random.split(key)
    x = jax.random.normal(kx, (B, S, C), jnp.float32)
    params = init_mixer_params(kp, num_tokens=S, num_channels=C)

    try:
        out = jax.block_until_ready(mixer_layer(x, params, True))
    except Exception:
        # Fallback if this JAX build rejects single-buffered weight BlockSpecs.
        out = jax.block_until_ready(mixer_layer(x, params, False))

    ref = _reference(x, params)

    assert out.shape == (B, S, C)
    # bf16 matmul operands (f32 accumulate) + tanh-GELU vs the f32/erf
    # reference => looser tolerance.
    err = float(jnp.max(jnp.abs(out - ref)))
    assert jnp.allclose(out, ref, atol=5e-2, rtol=5e-2), (
        f"mismatch vs reference, max abs err {err}")
    print("KERNEL_OK")
</pallas_src>

<mosaic_0001>
module attributes {stable_mosaic.version = 11 : i64} {
  func.func @_mixer_layer_kernel(%arg0: i32, %arg1: memref<2x8x32xf32, #tpu.memory_space<vmem>>, %arg2: memref<8x1xf32, #tpu.memory_space<vmem>>, %arg3: memref<8x1xf32, #tpu.memory_space<vmem>>, %arg4: memref<8x8xbf16, #tpu.memory_space<vmem>>, %arg5: memref<8x1xf32, #tpu.memory_space<vmem>>, %arg6: memref<8x8xbf16, #tpu.memory_space<vmem>>, %arg7: memref<8x1xf32, #tpu.memory_space<vmem>>, %arg8: memref<1x32xf32, #tpu.memory_space<vmem>>, %arg9: memref<1x32xf32, #tpu.memory_space<vmem>>, %arg10: memref<32x32xbf16, #tpu.memory_space<vmem>>, %arg11: memref<1x32xf32, #tpu.memory_space<vmem>>, %arg12: memref<32x32xbf16, #tpu.memory_space<vmem>>, %arg13: memref<1x32xf32, #tpu.memory_space<vmem>>, %arg14: memref<2x8x32xf32, #tpu.memory_space<vmem>>) attributes {dimension_semantics = [#tpu.dimension_semantics<parallel>], iteration_bounds = array<i64: 2>, scalar_prefetch = 0 : i64, scratch_operands = 0 : i64, tpu.core_type = #tpu.core_type<tc>, window_params = [{transform_indices = @transform_0, window_bounds = array<i64: 2, 8, 32>}, {pipeline_mode = #tpu.pipeline_mode<synchronous>, transform_indices = @transform_1, window_bounds = array<i64: 8, 1>}, {pipeline_mode = #tpu.pipeline_mode<synchronous>, transform_indices = @transform_2, window_bounds = array<i64: 8, 1>}, {pipeline_mode = #tpu.pipeline_mode<synchronous>, transform_indices = @transform_3, window_bounds = array<i64: 8, 8>}, {pipeline_mode = #tpu.pipeline_mode<synchronous>, transform_indices = @transform_4, window_bounds = array<i64: 8, 1>}, {pipeline_mode = #tpu.pipeline_mode<synchronous>, transform_indices = @transform_5, window_bounds = array<i64: 8, 8>}, {pipeline_mode = #tpu.pipeline_mode<synchronous>, transform_indices = @transform_6, window_bounds = array<i64: 8, 1>}, {pipeline_mode = #tpu.pipeline_mode<synchronous>, transform_indices = @transform_7, window_bounds = array<i64: 1, 32>}, {pipeline_mode = #tpu.pipeline_mode<synchronous>, transform_indices = @transform_8, window_bounds = array<i64: 1, 32>}, {pipeline_mode = #tpu.pipeline_mode<synchronous>, transform_indices = @transform_9, window_bounds = array<i64: 32, 32>}, {pipeline_mode = #tpu.pipeline_mode<synchronous>, transform_indices = @transform_10, window_bounds = array<i64: 1, 32>}, {pipeline_mode = #tpu.pipeline_mode<synchronous>, transform_indices = @transform_11, window_bounds = array<i64: 32, 32>}, {pipeline_mode = #tpu.pipeline_mode<synchronous>, transform_indices = @transform_12, window_bounds = array<i64: 1, 32>}, {transform_indices = @transform_13, window_bounds = array<i64: 2, 8, 32>}]} {
    %c0 = arith.constant 0 : index
    %c0_0 = arith.constant 0 : index
    %c0_1 = arith.constant 0 : index
    %0 = vector.load %arg1[%c0, %c0_0, %c0_1] : memref<2x8x32xf32, #tpu.memory_space<vmem>>, vector<2x8x32xf32>
    %cst = arith.constant dense<0.000000e+00> : vector<2x32xf32>
    %1 = vector.multi_reduction <add>, %0, %cst [1] : vector<2x8x32xf32> to vector<2x32xf32>
    %2 = vector.shape_cast %1 : vector<2x32xf32> to vector<2x1x32xf32>
    %cst_2 = arith.constant 8.000000e+00 : f32
    %3 = vector.broadcast %cst_2 : f32 to vector<2x1x32xf32>
    %4 = arith.divf %2, %3 : vector<2x1x32xf32>
    %5 = arith.mulf %0, %0 : vector<2x8x32xf32>
    %cst_3 = arith.constant dense<0.000000e+00> : vector<2x32xf32>
    %6 = vector.multi_reduction <add>, %5, %cst_3 [1] : vector<2x8x32xf32> to vector<2x32xf32>
    %7 = vector.shape_cast %6 : vector<2x32xf32> to vector<2x1x32xf32>
    %cst_4 = arith.constant 8.000000e+00 : f32
    %8 = vector.broadcast %cst_4 : f32 to vector<2x1x32xf32>
    %9 = arith.divf %7, %8 : vector<2x1x32xf32>
    %10 = arith.mulf %4, %4 : vector<2x1x32xf32>
    %11 = arith.subf %9, %10 : vector<2x1x32xf32>
    %12 = vector.broadcast %4 : vector<2x1x32xf32> to vector<2x8x32xf32>
    %13 = arith.subf %0, %12 : vector<2x8x32xf32>
    %cst_5 = arith.constant 9.99999974E-6 : f32
    %14 = vector.broadcast %cst_5 : f32 to vector<2x1x32xf32>
    %15 = arith.addf %11, %14 : vector<2x1x32xf32>
    %16 = math.rsqrt %15 : vector<2x1x32xf32>
    %17 = vector.broadcast %16 : vector<2x1x32xf32> to vector<2x8x32xf32>
    %18 = arith.mulf %13, %17 : vector<2x8x32xf32>
    %c0_6 = arith.constant 0 : index
    %c0_7 = arith.constant 0 : index
    %19 = vector.load %arg2[%c0_6, %c0_7] : memref<8x1xf32, #tpu.memory_space<vmem>>, vector<8x1xf32>
    %20 = vector.shape_cast %19 : vector<8x1xf32> to vector<1x8x1xf32>
    %21 = vector.broadcast %20 : vector<1x8x1xf32> to vector<2x8x32xf32>
    %22 = arith.mulf %18, %21 : vector<2x8x32xf32>
    %c0_8 = arith.constant 0 : index
    %c0_9 = arith.constant 0 : index
    %23 = vector.load %arg3[%c0_8, %c0_9] : memref<8x1xf32, #tpu.memory_space<vmem>>, vector<8x1xf32>
    %24 = vector.shape_cast %23 : vector<8x1xf32> to vector<1x8x1xf32>
    %25 = vector.broadcast %24 : vector<1x8x1xf32> to vector<2x8x32xf32>
    %26 = arith.addf %22, %25 : vector<2x8x32xf32>
    %27 = arith.truncf %26 : vector<2x8x32xf32> to vector<2x8x32xbf16>
    %c0_10 = arith.constant 0 : index
    %c0_11 = arith.constant 0 : index
    %28 = vector.load %arg4[%c0_10, %c0_11] : memref<8x8xbf16, #tpu.memory_space<vmem>>, vector<8x8xbf16>
    %c0_12 = arith.constant 0 : index
    %c0_13 = arith.constant 0 : index
    %29 = vector.load %arg5[%c0_12, %c0_13] : memref<8x1xf32, #tpu.memory_space<vmem>>, vector<8x1xf32>
    %c0_14 = arith.constant 0 : index
    %c0_15 = arith.constant 0 : index
    %30 = vector.load %arg6[%c0_14, %c0_15] : memref<8x8xbf16, #tpu.memory_space<vmem>>, vector<8x8xbf16>
    %c0_16 = arith.constant 0 : index
    %c0_17 = arith.constant 0 : index
    %31 = vector.load %arg7[%c0_16, %c0_17] : memref<8x1xf32, #tpu.memory_space<vmem>>, vector<8x1xf32>
    %32 = vector.extract_strided_slice %27 {offsets = [0, 0, 0], sizes = [1, 8, 32], strides = [1, 1, 1]} : vector<2x8x32xbf16> to vector<1x8x32xbf16>
    %33 = vector.shape_cast %32 : vector<1x8x32xbf16> to vector<8x32xbf16>
    %cst_18 = arith.constant dense<0.000000e+00> : vector<8x32xf32>
    %34 = tpu.matmul %28, %33, %cst_18 {dimension_numbers = #tpu.dot_dimension_numbers<[1], [0], [0], [1], [0, 0, 1, 1], [], []>} : vector<8x8xbf16>, vector<8x32xbf16>, vector<8x32xf32> -> vector<8x32xf32>
    %35 = vector.broadcast %29 : vector<8x1xf32> to vector<8x32xf32>
    %36 = arith.addf %34, %35 : vector<8x32xf32>
    %37 = arith.mulf %36, %36 : vector<8x32xf32>
    %38 = arith.mulf %36, %37 : vector<8x32xf32>
    %cst_19 = arith.constant 4.471500e-02 : f32
    %39 = vector.broadcast %cst_19 : f32 to vector<8x32xf32>
    %40 = arith.mulf %39, %38 : vector<8x32xf32>
    %41 = arith.addf %36, %40 : vector<8x32xf32>
    %cst_20 = arith.constant 0.797884583 : f32
    %42 = vector.broadcast %cst_20 : f32 to vector<8x32xf32>
    %43 = arith.mulf %42, %41 : vector<8x32xf32>
    %44 = math.tanh %43 : vector<8x32xf32>
    %cst_21 = arith.constant 1.000000e+00 : f32
    %45 = vector.broadcast %cst_21 : f32 to vector<8x32xf32>
    %46 = arith.addf %45, %44 : vector<8x32xf32>
    %cst_22 = arith.constant 5.000000e-01 : f32
    %47 = vector.broadcast %cst_22 : f32 to vector<8x32xf32>
    %48 = arith.mulf %47, %46 : vector<8x32xf32>
    %49 = arith.mulf %36, %48 : vector<8x32xf32>
    %50 = arith.truncf %49 : vector<8x32xf32> to vector<8x32xbf16>
    %cst_23 = arith.constant dense<0.000000e+00> : vector<8x32xf32>
    %51 = tpu.matmul %30, %50, %cst_23 {dimension_numbers = #tpu.dot_dimension_numbers<[1], [0], [0], [1], [0, 0, 1, 1], [], []>} : vector<8x8xbf16>, vector<8x32xbf16>, vector<8x32xf32> -> vector<8x32xf32>
    %52 = vector.broadcast %31 : vector<8x1xf32> to vector<8x32xf32>
    %53 = arith.addf %51, %52 : vector<8x32xf32>
    %54 = vector.extract_strided_slice %27 {offsets = [1, 0, 0], sizes = [1, 8, 32], strides = [1, 1, 1]} : vector<2x8x32xbf16> to vector<1x8x32xbf16>
    %55 = vector.shape_cast %54 : vector<1x8x32xbf16> to vector<8x32xbf16>
    %cst_24 = arith.constant dense<0.000000e+00> : vector<8x32xf32>
    %56 = tpu.matmul %28, %55, %cst_24 {dimension_numbers = #tpu.dot_dimension_numbers<[1], [0], [0], [1], [0, 0, 1, 1], [], []>} : vector<8x8xbf16>, vector<8x32xbf16>, vector<8x32xf32> -> vector<8x32xf32>
    %57 = vector.broadcast %29 : vector<8x1xf32> to vector<8x32xf32>
    %58 = arith.addf %56, %57 : vector<8x32xf32>
    %59 = arith.mulf %58, %58 : vector<8x32xf32>
    %60 = arith.mulf %58, %59 : vector<8x32xf32>
    %cst_25 = arith.constant 4.471500e-02 : f32
    %61 = vector.broadcast %cst_25 : f32 to vector<8x32xf32>
    %62 = arith.mulf %61, %60 : vector<8x32xf32>
    %63 = arith.addf %58, %62 : vector<8x32xf32>
    %cst_26 = arith.constant 0.797884583 : f32
    %64 = vector.broadcast %cst_26 : f32 to vector<8x32xf32>
    %65 = arith.mulf %64, %63 : vector<8x32xf32>
    %66 = math.tanh %65 : vector<8x32xf32>
    %cst_27 = arith.constant 1.000000e+00 : f32
    %67 = vector.broadcast %cst_27 : f32 to vector<8x32xf32>
    %68 = arith.addf %67, %66 : vector<8x32xf32>
    %cst_28 = arith.constant 5.000000e-01 : f32
    %69 = vector.broadcast %cst_28 : f32 to vector<8x32xf32>
    %70 = arith.mulf %69, %68 : vector<8x32xf32>
    %71 = arith.mulf %58, %70 : vector<8x32xf32>
    %72 = arith.truncf %71 : vector<8x32xf32> to vector<8x32xbf16>
    %cst_29 = arith.constant dense<0.000000e+00> : vector<8x32xf32>
    %73 = tpu.matmul %30, %72, %cst_29 {dimension_numbers = #tpu.dot_dimension_numbers<[1], [0], [0], [1], [0, 0, 1, 1], [], []>} : vector<8x8xbf16>, vector<8x32xbf16>, vector<8x32xf32> -> vector<8x32xf32>
    %74 = vector.broadcast %31 : vector<8x1xf32> to vector<8x32xf32>
    %75 = arith.addf %73, %74 : vector<8x32xf32>
    %76 = vector.shape_cast %53 : vector<8x32xf32> to vector<1x8x32xf32>
    %77 = vector.shape_cast %75 : vector<8x32xf32> to vector<1x8x32xf32>
    %78 = tpu.concatenate %76, %77 in 0 : vector<1x8x32xf32>, vector<1x8x32xf32> -> vector<2x8x32xf32>
    %79 = arith.addf %78, %0 : vector<2x8x32xf32>
    %80 = vector.shape_cast %79 : vector<2x8x32xf32> to vector<16x32xf32>
    %cst_30 = arith.constant dense<0.000000e+00> : vector<16xf32>
    %81 = vector.multi_reduction <add>, %80, %cst_30 [1] : vector<16x32xf32> to vector<16xf32>
    %82 = vector.shape_cast %81 : vector<16xf32> to vector<16x1xf32>
    %cst_31 = arith.constant 3.200000e+01 : f32
    %83 = vector.broadcast %cst_31 : f32 to vector<16x1xf32>
    %84 = arith.divf %82, %83 : vector<16x1xf32>
    %85 = arith.mulf %80, %80 : vector<16x32xf32>
    %cst_32 = arith.constant dense<0.000000e+00> : vector<16xf32>
    %86 = vector.multi_reduction <add>, %85, %cst_32 [1] : vector<16x32xf32> to vector<16xf32>
    %87 = vector.shape_cast %86 : vector<16xf32> to vector<16x1xf32>
    %cst_33 = arith.constant 3.200000e+01 : f32
    %88 = vector.broadcast %cst_33 : f32 to vector<16x1xf32>
    %89 = arith.divf %87, %88 : vector<16x1xf32>
    %90 = arith.mulf %84, %84 : vector<16x1xf32>
    %91 = arith.subf %89, %90 : vector<16x1xf32>
    %92 = vector.broadcast %84 : vector<16x1xf32> to vector<16x32xf32>
    %93 = arith.subf %80, %92 : vector<16x32xf32>
    %cst_34 = arith.constant 9.99999974E-6 : f32
    %94 = vector.broadcast %cst_34 : f32 to vector<16x1xf32>
    %95 = arith.addf %91, %94 : vector<16x1xf32>
    %96 = math.rsqrt %95 : vector<16x1xf32>
    %97 = vector.broadcast %96 : vector<16x1xf32> to vector<16x32xf32>
    %98 = arith.mulf %93, %97 : vector<16x32xf32>
    %c0_35 = arith.constant 0 : index
    %c0_36 = arith.constant 0 : index
    %99 = vector.load %arg8[%c0_35, %c0_36] : memref<1x32xf32, #tpu.memory_space<vmem>>, vector<1x32xf32>
    %100 = vector.broadcast %99 : vector<1x32xf32> to vector<16x32xf32>
    %101 = arith.mulf %98, %100 : vector<16x32xf32>
    %c0_37 = arith.constant 0 : index
    %c0_38 = arith.constant 0 : index
    %102 = vector.load %arg9[%c0_37, %c0_38] : memref<1x32xf32, #tpu.memory_space<vmem>>, vector<1x32xf32>
    %103 = vector.broadcast %102 : vector<1x32xf32> to vector<16x32xf32>
    %104 = arith.addf %101, %103 : vector<16x32xf32>
    %105 = arith.truncf %104 : vector<16x32xf32> to vector<16x32xbf16>
    %c0_39 = arith.constant 0 : index
    %c0_40 = arith.constant 0 : index
    %106 = vector.load %arg10[%c0_39, %c0_40] : memref<32x32xbf16, #tpu.memory_space<vmem>>, vector<32x32xbf16>
    %cst_41 = arith.constant dense<0.000000e+00> : vector<16x32xf32>
    %107 = tpu.matmul %105, %106, %cst_41 {dimension_numbers = #tpu.dot_dimension_numbers<[1], [0], [0], [1], [0, 0, 1, 1], [], []>} : vector<16x32xbf16>, vector<32x32xbf16>, vector<16x32xf32> -> vector<16x32xf32>
    %c0_42 = arith.constant 0 : index
    %c0_43 = arith.constant 0 : index
    %108 = vector.load %arg11[%c0_42, %c0_43] : memref<1x32xf32, #tpu.memory_space<vmem>>, vector<1x32xf32>
    %109 = vector.broadcast %108 : vector<1x32xf32> to vector<16x32xf32>
    %110 = arith.addf %107, %109 : vector<16x32xf32>
    %111 = arith.mulf %110, %110 : vector<16x32xf32>
    %112 = arith.mulf %110, %111 : vector<16x32xf32>
    %cst_44 = arith.constant 4.471500e-02 : f32
    %113 = vector.broadcast %cst_44 : f32 to vector<16x32xf32>
    %114 = arith.mulf %113, %112 : vector<16x32xf32>
    %115 = arith.addf %110, %114 : vector<16x32xf32>
    %cst_45 = arith.constant 0.797884583 : f32
    %116 = vector.broadcast %cst_45 : f32 to vector<16x32xf32>
    %117 = arith.mulf %116, %115 : vector<16x32xf32>
    %118 = math.tanh %117 : vector<16x32xf32>
    %cst_46 = arith.constant 1.000000e+00 : f32
    %119 = vector.broadcast %cst_46 : f32 to vector<16x32xf32>
    %120 = arith.addf %119, %118 : vector<16x32xf32>
    %cst_47 = arith.constant 5.000000e-01 : f32
    %121 = vector.broadcast %cst_47 : f32 to vector<16x32xf32>
    %122 = arith.mulf %121, %120 : vector<16x32xf32>
    %123 = arith.mulf %110, %122 : vector<16x32xf32>
    %124 = arith.truncf %123 : vector<16x32xf32> to vector<16x32xbf16>
    %c0_48 = arith.constant 0 : index
    %c0_49 = arith.constant 0 : index
    %125 = vector.load %arg12[%c0_48, %c0_49] : memref<32x32xbf16, #tpu.memory_space<vmem>>, vector<32x32xbf16>
    %cst_50 = arith.constant dense<0.000000e+00> : vector<16x32xf32>
    %126 = tpu.matmul %124, %125, %cst_50 {dimension_numbers = #tpu.dot_dimension_numbers<[1], [0], [0], [1], [0, 0, 1, 1], [], []>} : vector<16x32xbf16>, vector<32x32xbf16>, vector<16x32xf32> -> vector<16x32xf32>
    %c0_51 = arith.constant 0 : index
    %c0_52 = arith.constant 0 : index
    %127 = vector.load %arg13[%c0_51, %c0_52] : memref<1x32xf32, #tpu.memory_space<vmem>>, vector<1x32xf32>
    %128 = vector.broadcast %127 : vector<1x32xf32> to vector<16x32xf32>
    %129 = arith.addf %126, %128 : vector<16x32xf32>
    %130 = arith.addf %129, %80 : vector<16x32xf32>
    %131 = vector.shape_cast %130 : vector<16x32xf32> to vector<2x8x32xf32>
    %c0_53 = arith.constant 0 : index
    %c0_54 = arith.constant 0 : index
    %c0_55 = arith.constant 0 : index
    %132 = vector.load %arg14[%c0_53, %c0_54, %c0_55] : memref<2x8x32xf32, #tpu.memory_space<vmem>>, vector<2x8x32xf32>
    tpu.vector_store %arg14[%c0_53, %c0_54, %c0_55], %131 {strides = array<i32>} : memref<2x8x32xf32, #tpu.memory_space<vmem>>, vector<2x8x32xf32>,
    return
  }
  func.func @transform_0(%arg0: i32) -> (i32, i32, i32) {
    %c0_i32 = arith.constant 0 : i32
    %c0_i32_0 = arith.constant 0 : i32
    %c0_i32_1 = arith.constant 0 : i32
    return %arg0, %c0_i32, %c0_i32_0 : i32, i32, i32
  }
  func.func @transform_1(%arg0: i32) -> (i32, i32) {
    %c0_i32 = arith.constant 0 : i32
    %c0_i32_0 = arith.constant 0 : i32
    %c0_i32_1 = arith.constant 0 : i32
    return %c0_i32, %c0_i32_0 : i32, i32
  }
  func.func @transform_2(%arg0: i32) -> (i32, i32) {
    %c0_i32 = arith.constant 0 : i32
    %c0_i32_0 = arith.constant 0 : i32
    %c0_i32_1 = arith.constant 0 : i32
    return %c0_i32, %c0_i32_0 : i32, i32
  }
  func.func @transform_3(%arg0: i32) -> (i32, i32) {
    %c0_i32 = arith.constant 0 : i32
    %c0_i32_0 = arith.constant 0 : i32
    %c0_i32_1 = arith.constant 0 : i32
    return %c0_i32, %c0_i32_0 : i32, i32
  }
  func.func @transform_4(%arg0: i32) -> (i32, i32) {
    %c0_i32 = arith.constant 0 : i32
    %c0_i32_0 = arith.constant 0 : i32
    %c0_i32_1 = arith.constant 0 : i32
    return %c0_i32, %c0_i32_0 : i32, i32
  }
  func.func @transform_5(%arg0: i32) -> (i32, i32) {
    %c0_i32 = arith.constant 0 : i32
    %c0_i32_0 = arith.constant 0 : i32
    %c0_i32_1 = arith.constant 0 : i32
    return %c0_i32, %c0_i32_0 : i32, i32
  }
  func.func @transform_6(%arg0: i32) -> (i32, i32) {
    %c0_i32 = arith.constant 0 : i32
    %c0_i32_0 = arith.constant 0 : i32
    %c0_i32_1 = arith.constant 0 : i32
    return %c0_i32, %c0_i32_0 : i32, i32
  }
  func.func @transform_7(%arg0: i32) -> (i32, i32) {
    %c0_i32 = arith.constant 0 : i32
    %c0_i32_0 = arith.constant 0 : i32
    %c0_i32_1 = arith.constant 0 : i32
    return %c0_i32, %c0_i32_0 : i32, i32
  }
  func.func @transform_8(%arg0: i32) -> (i32, i32) {
    %c0_i32 = arith.constant 0 : i32
    %c0_i32_0 = arith.constant 0 : i32
    %c0_i32_1 = arith.constant 0 : i32
    return %c0_i32, %c0_i32_0 : i32, i32
  }
  func.func @transform_9(%arg0: i32) -> (i32, i32) {
    %c0_i32 = arith.constant 0 : i32
    %c0_i32_0 = arith.constant 0 : i32
    %c0_i32_1 = arith.constant 0 : i32
    return %c0_i32, %c0_i32_0 : i32, i32
  }
  func.func @transform_10(%arg0: i32) -> (i32, i32) {
    %c0_i32 = arith.constant 0 : i32
    %c0_i32_0 = arith.constant 0 : i32
    %c0_i32_1 = arith.constant 0 : i32
    return %c0_i32, %c0_i32_0 : i32, i32
  }
  func.func @transform_11(%arg0: i32) -> (i32, i32) {
    %c0_i32 = arith.constant 0 : i32
    %c0_i32_0 = arith.constant 0 : i32
    %c0_i32_1 = arith.constant 0 : i32
    return %c0_i32, %c0_i32_0 : i32, i32
  }
  func.func @transform_12(%arg0: i32) -> (i32, i32) {
    %c0_i32 = arith.constant 0 : i32
    %c0_i32_0 = arith.constant 0 : i32
    %c0_i32_1 = arith.constant 0 : i32
    return %c0_i32, %c0_i32_0 : i32, i32
  }
  func.func @transform_13(%arg0: i32) -> (i32, i32, i32) {
    %c0_i32 = arith.constant 0 : i32
    %c0_i32_0 = arith.constant 0 : i32
    %c0_i32_1 = arith.constant 0 : i32
    return %arg0, %c0_i32, %c0_i32_0 : i32, i32, i32
  }
}

module attributes {stable_mosaic.version = 11 : i64} {
  func.func @_mixer_layer_kernel(%arg0: i32, %arg1: memref<2x8x32xf32, #tpu.memory_space<vmem>>, %arg2: memref<8x1xf32, #tpu.memory_space<vmem>>, %arg3: memref<8x1xf32, #tpu.memory_space<vmem>>, %arg4: memref<8x8xbf16, #tpu.memory_space<vmem>>, %arg5: memref<8x1xf32, #tpu.memory_space<vmem>>, %arg6: memref<8x8xbf16, #tpu.memory_space<vmem>>, %arg7: memref<8x1xf32, #tpu.memory_space<vmem>>, %arg8: memref<1x32xf32, #tpu.memory_space<vmem>>, %arg9: memref<1x32xf32, #tpu.memory_space<vmem>>, %arg10: memref<32x32xbf16, #tpu.memory_space<vmem>>, %arg11: memref<1x32xf32, #tpu.memory_space<vmem>>, %arg12: memref<32x32xbf16, #tpu.memory_space<vmem>>, %arg13: memref<1x32xf32, #tpu.memory_space<vmem>>, %arg14: memref<2x8x32xf32, #tpu.memory_space<vmem>>) attributes {dimension_semantics = [#tpu.dimension_semantics<parallel>], iteration_bounds = array<i64: 2>, scalar_prefetch = 0 : i64, scratch_operands = 0 : i64, tpu.core_type = #tpu.core_type<tc>, window_params = [{transform_indices = @transform_0, window_bounds = array<i64: 2, 8, 32>}, {pipeline_mode = #tpu.pipeline_mode<synchronous>, transform_indices = @transform_1, window_bounds = array<i64: 8, 1>}, {pipeline_mode = #tpu.pipeline_mode<synchronous>, transform_indices = @transform_2, window_bounds = array<i64: 8, 1>}, {pipeline_mode = #tpu.pipeline_mode<synchronous>, transform_indices = @transform_3, window_bounds = array<i64: 8, 8>}, {pipeline_mode = #tpu.pipeline_mode<synchronous>, transform_indices = @transform_4, window_bounds = array<i64: 8, 1>}, {pipeline_mode = #tpu.pipeline_mode<synchronous>, transform_indices = @transform_5, window_bounds = array<i64: 8, 8>}, {pipeline_mode = #tpu.pipeline_mode<synchronous>, transform_indices = @transform_6, window_bounds = array<i64: 8, 1>}, {pipeline_mode = #tpu.pipeline_mode<synchronous>, transform_indices = @transform_7, window_bounds = array<i64: 1, 32>}, {pipeline_mode = #tpu.pipeline_mode<synchronous>, transform_indices = @transform_8, window_bounds = array<i64: 1, 32>}, {pipeline_mode = #tpu.pipeline_mode<synchronous>, transform_indices = @transform_9, window_bounds = array<i64: 32, 32>}, {pipeline_mode = #tpu.pipeline_mode<synchronous>, transform_indices = @transform_10, window_bounds = array<i64: 1, 32>}, {pipeline_mode = #tpu.pipeline_mode<synchronous>, transform_indices = @transform_11, window_bounds = array<i64: 32, 32>}, {pipeline_mode = #tpu.pipeline_mode<synchronous>, transform_indices = @transform_12, window_bounds = array<i64: 1, 32>}, {transform_indices = @transform_13, window_bounds = array<i64: 2, 8, 32>}]} {
    %c0 = arith.constant 0 : index
    %c0_0 = arith.constant 0 : index
    %c0_1 = arith.constant 0 : index
    %0 = vector.load %arg1[%c0, %c0_0, %c0_1] : memref<2x8x32xf32, #tpu.memory_space<vmem>>, vector<2x8x32xf32>
    %cst = arith.constant dense<0.000000e+00> : vector<2x32xf32>
    %1 = vector.multi_reduction <add>, %0, %cst [1] : vector<2x8x32xf32> to vector<2x32xf32>
    %2 = vector.shape_cast %1 : vector<2x32xf32> to vector<2x1x32xf32>
    %cst_2 = arith.constant 8.000000e+00 : f32
    %3 = vector.broadcast %cst_2 : f32 to vector<2x1x32xf32>
    %4 = arith.divf %2, %3 : vector<2x1x32xf32>
    %5 = arith.mulf %0, %0 : vector<2x8x32xf32>
    %cst_3 = arith.constant dense<0.000000e+00> : vector<2x32xf32>
    %6 = vector.multi_reduction <add>, %5, %cst_3 [1] : vector<2x8x32xf32> to vector<2x32xf32>
    %7 = vector.shape_cast %6 : vector<2x32xf32> to vector<2x1x32xf32>
    %cst_4 = arith.constant 8.000000e+00 : f32
    %8 = vector.broadcast %cst_4 : f32 to vector<2x1x32xf32>
    %9 = arith.divf %7, %8 : vector<2x1x32xf32>
    %10 = arith.mulf %4, %4 : vector<2x1x32xf32>
    %11 = arith.subf %9, %10 : vector<2x1x32xf32>
    %12 = vector.broadcast %4 : vector<2x1x32xf32> to vector<2x8x32xf32>
    %13 = arith.subf %0, %12 : vector<2x8x32xf32>
    %cst_5 = arith.constant 9.99999974E-6 : f32
    %14 = vector.broadcast %cst_5 : f32 to vector<2x1x32xf32>
    %15 = arith.addf %11, %14 : vector<2x1x32xf32>
    %16 = math.rsqrt %15 : vector<2x1x32xf32>
    %17 = vector.broadcast %16 : vector<2x1x32xf32> to vector<2x8x32xf32>
    %18 = arith.mulf %13, %17 : vector<2x8x32xf32>
    %c0_6 = arith.constant 0 : index
    %c0_7 = arith.constant 0 : index
    %19 = vector.load %arg2[%c0_6, %c0_7] : memref<8x1xf32, #tpu.memory_space<vmem>>, vector<8x1xf32>
    %20 = vector.shape_cast %19 : vector<8x1xf32> to vector<1x8x1xf32>
    %21 = vector.broadcast %20 : vector<1x8x1xf32> to vector<2x8x32xf32>
    %22 = arith.mulf %18, %21 : vector<2x8x32xf32>
    %c0_8 = arith.constant 0 : index
    %c0_9 = arith.constant 0 : index
    %23 = vector.load %arg3[%c0_8, %c0_9] : memref<8x1xf32, #tpu.memory_space<vmem>>, vector<8x1xf32>
    %24 = vector.shape_cast %23 : vector<8x1xf32> to vector<1x8x1xf32>
    %25 = vector.broadcast %24 : vector<1x8x1xf32> to vector<2x8x32xf32>
    %26 = arith.addf %22, %25 : vector<2x8x32xf32>
    %27 = arith.truncf %26 : vector<2x8x32xf32> to vector<2x8x32xbf16>
    %c0_10 = arith.constant 0 : index
    %c0_11 = arith.constant 0 : index
    %28 = vector.load %arg4[%c0_10, %c0_11] : memref<8x8xbf16, #tpu.memory_space<vmem>>, vector<8x8xbf16>
    %c0_12 = arith.constant 0 : index
    %c0_13 = arith.constant 0 : index
    %29 = vector.load %arg5[%c0_12, %c0_13] : memref<8x1xf32, #tpu.memory_space<vmem>>, vector<8x1xf32>
    %c0_14 = arith.constant 0 : index
    %c0_15 = arith.constant 0 : index
    %30 = vector.load %arg6[%c0_14, %c0_15] : memref<8x8xbf16, #tpu.memory_space<vmem>>, vector<8x8xbf16>
    %c0_16 = arith.constant 0 : index
    %c0_17 = arith.constant 0 : index
    %31 = vector.load %arg7[%c0_16, %c0_17] : memref<8x1xf32, #tpu.memory_space<vmem>>, vector<8x1xf32>
    %32 = vector.extract_strided_slice %27 {offsets = [0, 0, 0], sizes = [1, 8, 32], strides = [1, 1, 1]} : vector<2x8x32xbf16> to vector<1x8x32xbf16>
    %33 = vector.shape_cast %32 : vector<1x8x32xbf16> to vector<8x32xbf16>
    %cst_18 = arith.constant dense<0.000000e+00> : vector<8x32xf32>
    %34 = tpu.matmul %28, %33, %cst_18 {dimension_numbers = #tpu.dot_dimension_numbers<[1], [0], [0], [1], [0, 0, 1, 1], [], []>} : vector<8x8xbf16>, vector<8x32xbf16>, vector<8x32xf32> -> vector<8x32xf32>
    %35 = vector.broadcast %29 : vector<8x1xf32> to vector<8x32xf32>
    %36 = arith.addf %34, %35 : vector<8x32xf32>
    %37 = arith.mulf %36, %36 : vector<8x32xf32>
    %38 = arith.mulf %36, %37 : vector<8x32xf32>
    %cst_19 = arith.constant 4.471500e-02 : f32
    %39 = vector.broadcast %cst_19 : f32 to vector<8x32xf32>
    %40 = arith.mulf %39, %38 : vector<8x32xf32>
    %41 = arith.addf %36, %40 : vector<8x32xf32>
    %cst_20 = arith.constant 0.797884583 : f32
    %42 = vector.broadcast %cst_20 : f32 to vector<8x32xf32>
    %43 = arith.mulf %42, %41 : vector<8x32xf32>
    %44 = math.tanh %43 : vector<8x32xf32>
    %cst_21 = arith.constant 1.000000e+00 : f32
    %45 = vector.broadcast %cst_21 : f32 to vector<8x32xf32>
    %46 = arith.addf %45, %44 : vector<8x32xf32>
    %cst_22 = arith.constant 5.000000e-01 : f32
    %47 = vector.broadcast %cst_22 : f32 to vector<8x32xf32>
    %48 = arith.mulf %47, %46 : vector<8x32xf32>
    %49 = arith.mulf %36, %48 : vector<8x32xf32>
    %50 = arith.truncf %49 : vector<8x32xf32> to vector<8x32xbf16>
    %cst_23 = arith.constant dense<0.000000e+00> : vector<8x32xf32>
    %51 = tpu.matmul %30, %50, %cst_23 {dimension_numbers = #tpu.dot_dimension_numbers<[1], [0], [0], [1], [0, 0, 1, 1], [], []>} : vector<8x8xbf16>, vector<8x32xbf16>, vector<8x32xf32> -> vector<8x32xf32>
    %52 = vector.broadcast %31 : vector<8x1xf32> to vector<8x32xf32>
    %53 = arith.addf %51, %52 : vector<8x32xf32>
    %54 = vector.extract_strided_slice %27 {offsets = [1, 0, 0], sizes = [1, 8, 32], strides = [1, 1, 1]} : vector<2x8x32xbf16> to vector<1x8x32xbf16>
    %55 = vector.shape_cast %54 : vector<1x8x32xbf16> to vector<8x32xbf16>
    %cst_24 = arith.constant dense<0.000000e+00> : vector<8x32xf32>
    %56 = tpu.matmul %28, %55, %cst_24 {dimension_numbers = #tpu.dot_dimension_numbers<[1], [0], [0], [1], [0, 0, 1, 1], [], []>} : vector<8x8xbf16>, vector<8x32xbf16>, vector<8x32xf32> -> vector<8x32xf32>
    %57 = vector.broadcast %29 : vector<8x1xf32> to vector<8x32xf32>
    %58 = arith.addf %56, %57 : vector<8x32xf32>
    %59 = arith.mulf %58, %58 : vector<8x32xf32>
    %60 = arith.mulf %58, %59 : vector<8x32xf32>
    %cst_25 = arith.constant 4.471500e-02 : f32
    %61 = vector.broadcast %cst_25 : f32 to vector<8x32xf32>
    %62 = arith.mulf %61, %60 : vector<8x32xf32>
    %63 = arith.addf %58, %62 : vector<8x32xf32>
    %cst_26 = arith.constant 0.797884583 : f32
    %64 = vector.broadcast %cst_26 : f32 to vector<8x32xf32>
    %65 = arith.mulf %64, %63 : vector<8x32xf32>
    %66 = math.tanh %65 : vector<8x32xf32>
    %cst_27 = arith.constant 1.000000e+00 : f32
    %67 = vector.broadcast %cst_27 : f32 to vector<8x32xf32>
    %68 = arith.addf %67, %66 : vector<8x32xf32>
    %cst_28 = arith.constant 5.000000e-01 : f32
    %69 = vector.broadcast %cst_28 : f32 to vector<8x32xf32>
    %70 = arith.mulf %69, %68 : vector<8x32xf32>
    %71 = arith.mulf %58, %70 : vector<8x32xf32>
    %72 = arith.truncf %71 : vector<8x32xf32> to vector<8x32xbf16>
    %cst_29 = arith.constant dense<0.000000e+00> : vector<8x32xf32>
    %73 = tpu.matmul %30, %72, %cst_29 {dimension_numbers = #tpu.dot_dimension_numbers<[1], [0], [0], [1], [0, 0, 1, 1], [], []>} : vector<8x8xbf16>, vector<8x32xbf16>, vector<8x32xf32> -> vector<8x32xf32>
    %74 = vector.broadcast %31 : vector<8x1xf32> to vector<8x32xf32>
    %75 = arith.addf %73, %74 : vector<8x32xf32>
    %76 = vector.shape_cast %53 : vector<8x32xf32> to vector<1x8x32xf32>
    %77 = vector.shape_cast %75 : vector<8x32xf32> to vector<1x8x32xf32>
    %78 = tpu.concatenate %76, %77 in 0 : vector<1x8x32xf32>, vector<1x8x32xf32> -> vector<2x8x32xf32>
    %79 = arith.addf %78, %0 : vector<2x8x32xf32>
    %80 = vector.shape_cast %79 : vector<2x8x32xf32> to vector<16x32xf32>
    %cst_30 = arith.constant dense<0.000000e+00> : vector<16xf32>
    %81 = vector.multi_reduction <add>, %80, %cst_30 [1] : vector<16x32xf32> to vector<16xf32>
    %82 = vector.shape_cast %81 : vector<16xf32> to vector<16x1xf32>
    %cst_31 = arith.constant 3.200000e+01 : f32
    %83 = vector.broadcast %cst_31 : f32 to vector<16x1xf32>
    %84 = arith.divf %82, %83 : vector<16x1xf32>
    %85 = arith.mulf %80, %80 : vector<16x32xf32>
    %cst_32 = arith.constant dense<0.000000e+00> : vector<16xf32>
    %86 = vector.multi_reduction <add>, %85, %cst_32 [1] : vector<16x32xf32> to vector<16xf32>
    %87 = vector.shape_cast %86 : vector<16xf32> to vector<16x1xf32>
    %cst_33 = arith.constant 3.200000e+01 : f32
    %88 = vector.broadcast %cst_33 : f32 to vector<16x1xf32>
    %89 = arith.divf %87, %88 : vector<16x1xf32>
    %90 = arith.mulf %84, %84 : vector<16x1xf32>
    %91 = arith.subf %89, %90 : vector<16x1xf32>
    %92 = vector.broadcast %84 : vector<16x1xf32> to vector<16x32xf32>
    %93 = arith.subf %80, %92 : vector<16x32xf32>
    %cst_34 = arith.constant 9.99999974E-6 : f32
    %94 = vector.broadcast %cst_34 : f32 to vector<16x1xf32>
    %95 = arith.addf %91, %94 : vector<16x1xf32>
    %96 = math.rsqrt %95 : vector<16x1xf32>
    %97 = vector.broadcast %96 : vector<16x1xf32> to vector<16x32xf32>
    %98 = arith.mulf %93, %97 : vector<16x32xf32>
    %c0_35 = arith.constant 0 : index
    %c0_36 = arith.constant 0 : index
    %99 = vector.load %arg8[%c0_35, %c0_36] : memref<1x32xf32, #tpu.memory_space<vmem>>, vector<1x32xf32>
    %100 = vector.broadcast %99 : vector<1x32xf32> to vector<16x32xf32>
    %101 = arith.mulf %98, %100 : vector<16x32xf32>
    %c0_37 = arith.constant 0 : index
    %c0_38 = arith.constant 0 : index
    %102 = vector.load %arg9[%c0_37, %c0_38] : memref<1x32xf32, #tpu.memory_space<vmem>>, vector<1x32xf32>
    %103 = vector.broadcast %102 : vector<1x32xf32> to vector<16x32xf32>
    %104 = arith.addf %101, %103 : vector<16x32xf32>
    %105 = arith.truncf %104 : vector<16x32xf32> to vector<16x32xbf16>
    %c0_39 = arith.constant 0 : index
    %c0_40 = arith.constant 0 : index
    %106 = vector.load %arg10[%c0_39, %c0_40] : memref<32x32xbf16, #tpu.memory_space<vmem>>, vector<32x32xbf16>
    %cst_41 = arith.constant dense<0.000000e+00> : vector<16x32xf32>
    %107 = tpu.matmul %105, %106, %cst_41 {dimension_numbers = #tpu.dot_dimension_numbers<[1], [0], [0], [1], [0, 0, 1, 1], [], []>} : vector<16x32xbf16>, vector<32x32xbf16>, vector<16x32xf32> -> vector<16x32xf32>
    %c0_42 = arith.constant 0 : index
    %c0_43 = arith.constant 0 : index
    %108 = vector.load %arg11[%c0_42, %c0_43] : memref<1x32xf32, #tpu.memory_space<vmem>>, vector<1x32xf32>
    %109 = vector.broadcast %108 : vector<1x32xf32> to vector<16x32xf32>
    %110 = arith.addf %107, %109 : vector<16x32xf32>
    %111 = arith.mulf %110, %110 : vector<16x32xf32>
    %112 = arith.mulf %110, %111 : vector<16x32xf32>
    %cst_44 = arith.constant 4.471500e-02 : f32
    %113 = vector.broadcast %cst_44 : f32 to vector<16x32xf32>
    %114 = arith.mulf %113, %112 : vector<16x32xf32>
    %115 = arith.addf %110, %114 : vector<16x32xf32>
    %cst_45 = arith.constant 0.797884583 : f32
    %116 = vector.broadcast %cst_45 : f32 to vector<16x32xf32>
    %117 = arith.mulf %116, %115 : vector<16x32xf32>
    %118 = math.tanh %117 : vector<16x32xf32>
    %cst_46 = arith.constant 1.000000e+00 : f32
    %119 = vector.broadcast %cst_46 : f32 to vector<16x32xf32>
    %120 = arith.addf %119, %118 : vector<16x32xf32>
    %cst_47 = arith.constant 5.000000e-01 : f32
    %121 = vector.broadcast %cst_47 : f32 to vector<16x32xf32>
    %122 = arith.mulf %121, %120 : vector<16x32xf32>
    %123 = arith.mulf %110, %122 : vector<16x32xf32>
    %124 = arith.truncf %123 : vector<16x32xf32> to vector<16x32xbf16>
    %c0_48 = arith.constant 0 : index
    %c0_49 = arith.constant 0 : index
    %125 = vector.load %arg12[%c0_48, %c0_49] : memref<32x32xbf16, #tpu.memory_space<vmem>>, vector<32x32xbf16>
    %cst_50 = arith.constant dense<0.000000e+00> : vector<16x32xf32>
    %126 = tpu.matmul %124, %125, %cst_50 {dimension_numbers = #tpu.dot_dimension_numbers<[1], [0], [0], [1], [0, 0, 1, 1], [], []>} : vector<16x32xbf16>, vector<32x32xbf16>, vector<16x32xf32> -> vector<16x32xf32>
    %c0_51 = arith.constant 0 : index
    %c0_52 = arith.constant 0 : index
    %127 = vector.load %arg13[%c0_51, %c0_52] : memref<1x32xf32, #tpu.memory_space<vmem>>, vector<1x32xf32>
    %128 = vector.broadcast %127 : vector<1x32xf32> to vector<16x32xf32>
    %129 = arith.addf %126, %128 : vector<16x32xf32>
    %130 = arith.addf %129, %80 : vector<16x32xf32>
    %131 = vector.shape_cast %130 : vector<16x32xf32> to vector<2x8x32xf32>
    %c0_53 = arith.constant 0 : index
    %c0_54 = arith.constant 0 : index
    %c0_55 = arith.constant 0 : index
    %132 = vector.load %arg14[%c0_53, %c0_54, %c0_55] : memref<2x8x32xf32, #tpu.memory_space<vmem>>, vector<2x8x32xf32>
    tpu.vector_store %arg14[%c0_53, %c0_54, %c0_55], %131 {strides = array<i32>} : memref<2x8x32xf32, #tpu.memory_space<vmem>>, vector<2x8x32xf32>,
    return
  }
  func.func @transform_0(%arg0: i32) -> (i32, i32, i32) {
    %c0_i32 = arith.constant 0 : i32
    %c0_i32_0 = arith.constant 0 : i32
    %c0_i32_1 = arith.constant 0 : i32
    return %arg0, %c0_i32, %c0_i32_0 : i32, i32, i32
  }
  func.func @transform_1(%arg0: i32) -> (i32, i32) {
    %c0_i32 = arith.constant 0 : i32
    %c0_i32_0 = arith.constant 0 : i32
    %c0_i32_1 = arith.constant 0 : i32
    return %c0_i32, %c0_i32_0 : i32, i32
  }
  func.func @transform_2(%arg0: i32) -> (i32, i32) {
    %c0_i32 = arith.constant 0 : i32
    %c0_i32_0 = arith.constant 0 : i32
    %c0_i32_1 = arith.constant 0 : i32
    return %c0_i32, %c0_i32_0 : i32, i32
  }
  func.func @transform_3(%arg0: i32) -> (i32, i32) {
    %c0_i32 = arith.constant 0 : i32
    %c0_i32_0 = arith.constant 0 : i32
    %c0_i32_1 = arith.constant 0 : i32
    return %c0_i32, %c0_i32_0 : i32, i32
  }
  func.func @transform_4(%arg0: i32) -> (i32, i32) {
    %c0_i32 = arith.constant 0 : i32
    %c0_i32_0 = arith.constant 0 : i32
    %c0_i32_1 = arith.constant 0 : i32
    return %c0_i32, %c0_i32_0 : i32, i32
  }
  func.func @transform_5(%arg0: i32) -> (i32, i32) {
    %c0_i32 = arith.constant 0 : i32
    %c0_i32_0 = arith.constant 0 : i32
    %c0_i32_1 = arith.constant 0 : i32
    return %c0_i32, %c0_i32_0 : i32, i32
  }
  func.func @transform_6(%arg0: i32) -> (i32, i32) {
    %c0_i32 = arith.constant 0 : i32
    %c0_i32_0 = arith.constant 0 : i32
    %c0_i32_1 = arith.constant 0 : i32
    return %c0_i32, %c0_i32_0 : i32, i32
  }
  func.func @transform_7(%arg0: i32) -> (i32, i32) {
    %c0_i32 = arith.constant 0 : i32
    %c0_i32_0 = arith.constant 0 : i32
    %c0_i32_1 = arith.constant 0 : i32
    return %c0_i32, %c0_i32_0 : i32, i32
  }
  func.func @transform_8(%arg0: i32) -> (i32, i32) {
    %c0_i32 = arith.constant 0 : i32
    %c0_i32_0 = arith.constant 0 : i32
    %c0_i32_1 = arith.constant 0 : i32
    return %c0_i32, %c0_i32_0 : i32, i32
  }
  func.func @transform_9(%arg0: i32) -> (i32, i32) {
    %c0_i32 = arith.constant 0 : i32
    %c0_i32_0 = arith.constant 0 : i32
    %c0_i32_1 = arith.constant 0 : i32
    return %c0_i32, %c0_i32_0 : i32, i32
  }
  func.func @transform_10(%arg0: i32) -> (i32, i32) {
    %c0_i32 = arith.constant 0 : i32
    %c0_i32_0 = arith.constant 0 : i32
    %c0_i32_1 = arith.constant 0 : i32
    return %c0_i32, %c0_i32_0 : i32, i32
  }
  func.func @transform_11(%arg0: i32) -> (i32, i32) {
    %c0_i32 = arith.constant 0 : i32
    %c0_i32_0 = arith.constant 0 : i32
    %c0_i32_1 = arith.constant 0 : i32
    return %c0_i32, %c0_i32_0 : i32, i32
  }
  func.func @transform_12(%arg0: i32) -> (i32, i32) {
    %c0_i32 = arith.constant 0 : i32
    %c0_i32_0 = arith.constant 0 : i32
    %c0_i32_1 = arith.constant 0 : i32
    return %c0_i32, %c0_i32_0 : i32, i32
  }
  func.func @transform_13(%arg0: i32) -> (i32, i32, i32) {
    %c0_i32 = arith.constant 0 : i32
    %c0_i32_0 = arith.constant 0 : i32
    %c0_i32_1 = arith.constant 0 : i32
    return %arg0, %c0_i32, %c0_i32_0 : i32, i32, i32
  }
}

</mosaic_0001>

<llo_original>
// kernel: mixer_layer.1
$region0: #{mixer_layer.1}
  #allocation0 [shape = 'u32[]', space=smem, size = 0x4, offset = 0x4, fixed_abs, tag = 'smem constant byte address 0x4 - core index']
  #allocation1 [shape = 'u32[72,128]{1,0:T(1,128)}', space=vmem, size = 0x9000, scoped, tag = 'internal scratch']
  %s0 = inlined_call_operand.vmem [shape: f32[4,8,32], index: 0, kind: input, shape index: {}]
  %s1 = inlined_call_operand.vmem [shape: f32[8,1], index: 1, kind: input, shape index: {}]
  %s2 = inlined_call_operand.vmem [shape: f32[8,1], index: 2, kind: input, shape index: {}]
  %s3 = inlined_call_operand.vmem [shape: bf16[8,8], index: 3, kind: input, shape index: {}]
  %s4 = inlined_call_operand.vmem [shape: f32[8,1], index: 4, kind: input, shape index: {}]
  %s5 = inlined_call_operand.vmem [shape: bf16[8,8], index: 5, kind: input, shape index: {}]
  %s6 = inlined_call_operand.vmem [shape: f32[8,1], index: 6, kind: input, shape index: {}]
  %s7 = inlined_call_operand.vmem [shape: f32[1,32], index: 7, kind: input, shape index: {}]
  %s8 = inlined_call_operand.vmem [shape: f32[1,32], index: 8, kind: input, shape index: {}]
  %s9 = inlined_call_operand.vmem [shape: bf16[32,32], index: 9, kind: input, shape index: {}]
  %s10 = inlined_call_operand.vmem [shape: f32[1,32], index: 10, kind: input, shape index: {}]
  %s11 = inlined_call_operand.vmem [shape: bf16[32,32], index: 11, kind: input, shape index: {}]
  %s12 = inlined_call_operand.vmem [shape: f32[1,32], index: 12, kind: input, shape index: {}]
  %s13 = inlined_call_operand.hbm [shape: f32[4,8,32], index: 13, kind: output, shape index: {}]
  %s14 = sld [smem:[#allocation0]]
  $region85: #{mixer_layer.1} parent=0
    _
  %s16 = ssub.s32 1, %s14
  %s17 = scalar_select 0, %s16, %s14
  $region1: #{mixer_layer.1} parent=0
    #allocation2 [shape = 'u8[16384]{0}', space=vmem, size = 0x4000, scoped, tag = 'output window, operand 0']
    #allocation3 [shape = 's32[2]{0}', space=sflag, size = 0x8, scoped, tag = 'scoped memory for mixer_layer.1']
    %18 = vsyncpa [#allocation3], 0
    %s19 = scalar_lea.sflag [#allocation3], 1
    %20 = vsyncpa %s19, 0
    loop: start=0, step=1, limit=4
    $region2: #{mixer_layer.1} parent=1 // loop_pre_header
      _
    $region3: #{mixer_layer.1} parent=1 // loop_header
      %s22 = sphi 0, %s26
      %p23 = scmp.ge.s32.totalorder %s22, 4
      %s32 = sphi 0, %s34
      %s35 = sphi 0, %s32
      %s36 = sphi 0, %s35
      %s52 = sphi 0, %s36
      %s56 = sphi 0, %s56
      %s58 = sphi 0, %s56
      %s59 = sphi 0, %s58
      %s73 = sphi 0, %s59
      %s77 = sphi 0, %s77
      %s79 = sphi 0, %s77
      %s80 = sphi 0, %s79
      %s94 = sphi 0, %s80
      %s98 = sphi 0, %s98
      %s100 = sphi 0, %s98
      %s101 = sphi 0, %s100
      %s115 = sphi 0, %s101
      %s119 = sphi 0, %s119
      %s121 = sphi 0, %s119
      %s122 = sphi 0, %s121
      %s136 = sphi 0, %s122
      %s140 = sphi 0, %s140
      %s142 = sphi 0, %s140
      %s143 = sphi 0, %s142
      %s157 = sphi 0, %s143
      %s161 = sphi 0, %s161
      %s163 = sphi 0, %s161
      %s164 = sphi 0, %s163
      %s178 = sphi 0, %s164
      %s182 = sphi 0, %s182
      %s184 = sphi 0, %s182
      %s185 = sphi 0, %s184
      %s199 = sphi 0, %s185
      %s203 = sphi 0, %s203
      %s205 = sphi 0, %s203
      %s206 = sphi 0, %s205
      %s220 = sphi 0, %s206
      %s224 = sphi 0, %s224
      %s226 = sphi 0, %s224
      %s227 = sphi 0, %s226
      %s241 = sphi 0, %s227
      %s245 = sphi 0, %s245
      %s247 = sphi 0, %s245
      %s248 = sphi 0, %s247
      %s262 = sphi 0, %s248
      %s266 = sphi 0, %s266
      %s268 = sphi 0, %s266
      %s269 = sphi 0, %s268
      %s283 = sphi 0, %s269
      %s287 = sphi 0, %s287
      %s289 = sphi 0, %s287
      %s290 = sphi 0, %s289
      %s304 = sphi 0, %s290
      %s310 = sphi 0, %s312
      %s313 = sphi 0, %s310
      %s314 = sphi 0, %s313
      %s330 = sphi 0, %s314
    $region4: #{mixer_layer.1} parent=1 // loop_header_branch
      %25 = sbr.rel (%p23) target = $region8
    $region5: #{mixer_layer.1} parent=1 // loop_body
      %s27 = ssub.s32 %s22, 1
      %s28 = ssub.s32 %s22, 2
      %s29 = sadd.s32 %s22, 1
      %s30 = ssub.s32 %s22, %s29
      %p31 = scmp.eq.s32.totalorder %s30, 0
      %s33 = sadd.s32 %s32, 1
      %s34 = scalar_select %p31, %s32, %s33
      %p37 = pneg %p31
      %p38 = scmp.eq.s32.totalorder %s22, 1
      %p39 = por %p37, %p38
      %p40 = scmp.ne.s32.totalorder %s32, %s35
      %p41 = scmp.eq.s32.totalorder %s22, 0
      %p42 = por %p40, %p41
      %p43 = scmp.ne.s32.totalorder %s32, %s35
      %p44 = scmp.eq.s32.totalorder %s27, 1
      %p45 = por %p43, %p44
      %p46 = scmp.ne.s32.totalorder %s35, %s36
      %p47 = scmp.eq.s32.totalorder %s27, 0
      %p48 = por %p46, %p47
      %p49 = scmp.ne.s32.totalorder %s35, %s36
      %p50 = scmp.eq.s32.totalorder %s28, 1
      %p51 = por %p49, %p50
      %p53 = scmp.ne.s32.totalorder %s36, %s52
      %p54 = scmp.eq.s32.totalorder %s28, 0
      %p55 = por %p53, %p54
      %s57 = sadd.s32 %s56, 1
      %p60 = scmp.eq.s32.totalorder %s22, 1
      %p61 = scmp.ne.s32.totalorder %s56, %s58
      %p62 = scmp.eq.s32.totalorder %s22, 0
      %p63 = por %p61, %p62
      %p64 = scmp.ne.s32.totalorder %s56, %s58
      %p65 = scmp.eq.s32.totalorder %s27, 1
      %p66 = por %p64, %p65
      %p67 = scmp.ne.s32.totalorder %s58, %s59
      %p68 = scmp.eq.s32.totalorder %s27, 0
      %p69 = por %p67, %p68
      %p70 = scmp.ne.s32.totalorder %s58, %s59
      %p71 = scmp.eq.s32.totalorder %s28, 1
      %p72 = por %p70, %p71
      %p74 = scmp.ne.s32.totalorder %s59, %s73
      %p75 = scmp.eq.s32.totalorder %s28, 0
      %p76 = por %p74, %p75
      %s78 = sadd.s32 %s77, 1
      %p81 = scmp.eq.s32.totalorder %s22, 1
      %p82 = scmp.ne.s32.totalorder %s77, %s79
      %p83 = scmp.eq.s32.totalorder %s22, 0
      %p84 = por %p82, %p83
      %p85 = scmp.ne.s32.totalorder %s77, %s79
      %p86 = scmp.eq.s32.totalorder %s27, 1
      %p87 = por %p85, %p86
      %p88 = scmp.ne.s32.totalorder %s79, %s80
      %p89 = scmp.eq.s32.totalorder %s27, 0
      %p90 = por %p88, %p89
      %p91 = scmp.ne.s32.totalorder %s79, %s80
      %p92 = scmp.eq.s32.totalorder %s28, 1
      %p93 = por %p91, %p92
      %p95 = scmp.ne.s32.totalorder %s80, %s94
      %p96 = scmp.eq.s32.totalorder %s28, 0
      %p97 = por %p95, %p96
      %s99 = sadd.s32 %s98, 1
      %p102 = scmp.eq.s32.totalorder %s22, 1
      %p103 = scmp.ne.s32.totalorder %s98, %s100
      %p104 = scmp.eq.s32.totalorder %s22, 0
      %p105 = por %p103, %p104
      %p106 = scmp.ne.s32.totalorder %s98, %s100
      %p107 = scmp.eq.s32.totalorder %s27, 1
      %p108 = por %p106, %p107
      %p109 = scmp.ne.s32.totalorder %s100, %s101
      %p110 = scmp.eq.s32.totalorder %s27, 0
      %p111 = por %p109, %p110
      %p112 = scmp.ne.s32.totalorder %s100, %s101
      %p113 = scmp.eq.s32.totalorder %s28, 1
      %p114 = por %p112, %p113
      %p116 = scmp.ne.s32.totalorder %s101, %s115
      %p117 = scmp.eq.s32.totalorder %s28, 0
      %p118 = por %p116, %p117
      %s120 = sadd.s32 %s119, 1
      %p123 = scmp.eq.s32.totalorder %s22, 1
      %p124 = scmp.ne.s32.totalorder %s119, %s121
      %p125 = scmp.eq.s32.totalorder %s22, 0
      %p126 = por %p124, %p125
      %p127 = scmp.ne.s32.totalorder %s119, %s121
      %p128 = scmp.eq.s32.totalorder %s27, 1
      %p129 = por %p127, %p128
      %p130 = scmp.ne.s32.totalorder %s121, %s122
      %p131 = scmp.eq.s32.totalorder %s27, 0
      %p132 = por %p130, %p131
      %p133 = scmp.ne.s32.totalorder %s121, %s122
      %p134 = scmp.eq.s32.totalorder %s28, 1
      %p135 = por %p133, %p134
      %p137 = scmp.ne.s32.totalorder %s122, %s136
      %p138 = scmp.eq.s32.totalorder %s28, 0
      %p139 = por %p137, %p138
      %s141 = sadd.s32 %s140, 1
      %p144 = scmp.eq.s32.totalorder %s22, 1
      %p145 = scmp.ne.s32.totalorder %s140, %s142
      %p146 = scmp.eq.s32.totalorder %s22, 0
      %p147 = por %p145, %p146
      %p148 = scmp.ne.s32.totalorder %s140, %s142
      %p149 = scmp.eq.s32.totalorder %s27, 1
      %p150 = por %p148, %p149
      %p151 = scmp.ne.s32.totalorder %s142, %s143
      %p152 = scmp.eq.s32.totalorder %s27, 0
      %p153 = por %p151, %p152
      %p154 = scmp.ne.s32.totalorder %s142, %s143
      %p155 = scmp.eq.s32.totalorder %s28, 1
      %p156 = por %p154, %p155
      %p158 = scmp.ne.s32.totalorder %s143, %s157
      %p159 = scmp.eq.s32.totalorder %s28, 0
      %p160 = por %p158, %p159
      %s162 = sadd.s32 %s161, 1
      %p165 = scmp.eq.s32.totalorder %s22, 1
      %p166 = scmp.ne.s32.totalorder %s161, %s163
      %p167 = scmp.eq.s32.totalorder %s22, 0
      %p168 = por %p166, %p167
      %p169 = scmp.ne.s32.totalorder %s161, %s163
      %p170 = scmp.eq.s32.totalorder %s27, 1
      %p171 = por %p169, %p170
      %p172 = scmp.ne.s32.totalorder %s163, %s164
      %p173 = scmp.eq.s32.totalorder %s27, 0
      %p174 = por %p172, %p173
      %p175 = scmp.ne.s32.totalorder %s163, %s164
      %p176 = scmp.eq.s32.totalorder %s28, 1
      %p177 = por %p175, %p176
      %p179 = scmp.ne.s32.totalorder %s164, %s178
      %p180 = scmp.eq.s32.totalorder %s28, 0
      %p181 = por %p179, %p180
      %s183 = sadd.s32 %s182, 1
      %p186 = scmp.eq.s32.totalorder %s22, 1
      %p187 = scmp.ne.s32.totalorder %s182, %s184
      %p188 = scmp.eq.s32.totalorder %s22, 0
      %p189 = por %p187, %p188
      %p190 = scmp.ne.s32.totalorder %s182, %s184
      %p191 = scmp.eq.s32.totalorder %s27, 1
      %p192 = por %p190, %p191
      %p193 = scmp.ne.s32.totalorder %s184, %s185
      %p194 = scmp.eq.s32.totalorder %s27, 0
      %p195 = por %p193, %p194
      %p196 = scmp.ne.s32.totalorder %s184, %s185
      %p197 = scmp.eq.s32.totalorder %s28, 1
      %p198 = por %p196, %p197
      %p200 = scmp.ne.s32.totalorder %s185, %s199
      %p201 = scmp.eq.s32.totalorder %s28, 0
      %p202 = por %p200, %p201
      %s204 = sadd.s32 %s203, 1
      %p207 = scmp.eq.s32.totalorder %s22, 1
      %p208 = scmp.ne.s32.totalorder %s203, %s205
      %p209 = scmp.eq.s32.totalorder %s22, 0
      %p210 = por %p208, %p209
      %p211 = scmp.ne.s32.totalorder %s203, %s205
      %p212 = scmp.eq.s32.totalorder %s27, 1
      %p213 = por %p211, %p212
      %p214 = scmp.ne.s32.totalorder %s205, %s206
      %p215 = scmp.eq.s32.totalorder %s27, 0
      %p216 = por %p214, %p215
      %p217 = scmp.ne.s32.totalorder %s205, %s206
      %p218 = scmp.eq.s32.totalorder %s28, 1
      %p219 = por %p217, %p218
      %p221 = scmp.ne.s32.totalorder %s206, %s220
      %p222 = scmp.eq.s32.totalorder %s28, 0
      %p223 = por %p221, %p222
      %s225 = sadd.s32 %s224, 1
      %p228 = scmp.eq.s32.totalorder %s22, 1
      %p229 = scmp.ne.s32.totalorder %s224, %s226
      %p230 = scmp.eq.s32.totalorder %s22, 0
      %p231 = por %p229, %p230
      %p232 = scmp.ne.s32.totalorder %s224, %s226
      %p233 = scmp.eq.s32.totalorder %s27, 1
      %p234 = por %p232, %p233
      %p235 = scmp.ne.s32.totalorder %s226, %s227
      %p236 = scmp.eq.s32.totalorder %s27, 0
      %p237 = por %p235, %p236
      %p238 = scmp.ne.s32.totalorder %s226, %s227
      %p239 = scmp.eq.s32.totalorder %s28, 1
      %p240 = por %p238, %p239
      %p242 = scmp.ne.s32.totalorder %s227, %s241
      %p243 = scmp.eq.s32.totalorder %s28, 0
      %p244 = por %p242, %p243
      %s246 = sadd.s32 %s245, 1
      %p249 = scmp.eq.s32.totalorder %s22, 1
      %p250 = scmp.ne.s32.totalorder %s245, %s247
      %p251 = scmp.eq.s32.totalorder %s22, 0
      %p252 = por %p250, %p251
      %p253 = scmp.ne.s32.totalorder %s245, %s247
      %p254 = scmp.eq.s32.totalorder %s27, 1
      %p255 = por %p253, %p254
      %p256 = scmp.ne.s32.totalorder %s247, %s248
      %p257 = scmp.eq.s32.totalorder %s27, 0
      %p258 = por %p256, %p257
      %p259 = scmp.ne.s32.totalorder %s247, %s248
      %p260 = scmp.eq.s32.totalorder %s28, 1
      %p261 = por %p259, %p260
      %p263 = scmp.ne.s32.totalorder %s248, %s262
      %p264 = scmp.eq.s32.totalorder %s28, 0
      %p265 = por %p263, %p264
      %s267 = sadd.s32 %s266, 1
      %p270 = scmp.eq.s32.totalorder %s22, 1
      %p271 = scmp.ne.s32.totalorder %s266, %s268
      %p272 = scmp.eq.s32.totalorder %s22, 0
      %p273 = por %p271, %p272
      %p274 = scmp.ne.s32.totalorder %s266, %s268
      %p275 = scmp.eq.s32.totalorder %s27, 1
      %p276 = por %p274, %p275
      %p277 = scmp.ne.s32.totalorder %s268, %s269
      %p278 = scmp.eq.s32.totalorder %s27, 0
      %p279 = por %p277, %p278
      %p280 = scmp.ne.s32.totalorder %s268, %s269
      %p281 = scmp.eq.s32.totalorder %s28, 1
      %p282 = por %p280, %p281
      %p284 = scmp.ne.s32.totalorder %s269, %s283
      %p285 = scmp.eq.s32.totalorder %s28, 0
      %p286 = por %p284, %p285
      %s288 = sadd.s32 %s287, 1
      %p291 = scmp.eq.s32.totalorder %s22, 1
      %p292 = scmp.ne.s32.totalorder %s287, %s289
      %p293 = scmp.eq.s32.totalorder %s22, 0
      %p294 = por %p292, %p293
      %p295 = scmp.ne.s32.totalorder %s287, %s289
      %p296 = scmp.eq.s32.totalorder %s27, 1
      %p297 = por %p295, %p296
      %p298 = scmp.ne.s32.totalorder %s289, %s290
      %p299 = scmp.eq.s32.totalorder %s27, 0
      %p300 = por %p298, %p299
      %p301 = scmp.ne.s32.totalorder %s289, %s290
      %p302 = scmp.eq.s32.totalorder %s28, 1
      %p303 = por %p301, %p302
      %p305 = scmp.ne.s32.totalorder %s290, %s304
      %p306 = scmp.eq.s32.totalorder %s28, 0
      %p307 = por %p305, %p306
      %s308 = ssub.s32 %s22, %s29
      %p309 = scmp.eq.s32.totalorder %s308, 0
      %s311 = sadd.s32 %s310, 1
      %s312 = scalar_select %p309, %s310, %s311
      %p315 = pneg %p309
      %p316 = scmp.eq.s32.totalorder %s22, 1
      %p317 = por %p315, %p316
      %p318 = scmp.ne.s32.totalorder %s310, %s313
      %p319 = scmp.eq.s32.totalorder %s22, 0
      %p320 = por %p318, %p319
      %p321 = scmp.ne.s32.totalorder %s310, %s313
      %p322 = scmp.eq.s32.totalorder %s27, 1
      %p323 = por %p321, %p322
      %p324 = scmp.ne.s32.totalorder %s313, %s314
      %p325 = scmp.eq.s32.totalorder %s27, 0
      %p326 = por %p324, %p325
      %p327 = scmp.ne.s32.totalorder %s313, %s314
      %p328 = scmp.eq.s32.totalorder %s28, 1
      %p329 = por %p327, %p328
      %p331 = scmp.ne.s32.totalorder %s314, %s330
      %p332 = scmp.eq.s32.totalorder %s28, 0
      %p333 = por %p331, %p332
      %p334 = scmp.le.s32.totalorder 1, %s22
      %p335 = scmp.lt.s32.totalorder %s22, 3
      %p336 = pnand %p334, %p335
      %p337 = pneg %p336
      // Predicated region
      $region9: #{mixer_layer.1} parent=5 // pred_check
        _
      $region10: #{mixer_layer.1} parent=5 // pred_check_branch
        %339 = sbr.rel (%p336) target = $region12
      $region11: #{mixer_layer.1} parent=5 // pred_region
        %s340 = ssub.s32 %s22, 1
        // Predicated region
        $region13: #{mixer_layer.1} parent=11 // pred_check
          %p341 = pneg %p69
        $region14: #{mixer_layer.1} parent=11 // pred_check_branch
          %343 = sbr.rel (%p341) target = $region16
        $region15: #{mixer_layer.1} parent=11 // pred_region
          _
        $region16: #{mixer_layer.1} parent=11 // pred_fallthru
          _
        // Predicated region
        $region17: #{mixer_layer.1} parent=11 // pred_check
          %p344 = pneg %p90
        $region18: #{mixer_layer.1} parent=11 // pred_check_branch
          %346 = sbr.rel (%p344) target = $region20
        $region19: #{mixer_layer.1} parent=11 // pred_region
          _
        $region20: #{mixer_layer.1} parent=11 // pred_fallthru
          _
        // Predicated region
        $region21: #{mixer_layer.1} parent=11 // pred_check
          %p347 = pneg %p111
        $region22: #{mixer_layer.1} parent=11 // pred_check_branch
          %349 = sbr.rel (%p347) target = $region24
        $region23: #{mixer_layer.1} parent=11 // pred_region
          _
        $region24: #{mixer_layer.1} parent=11 // pred_fallthru
          _
        // Predicated region
        $region25: #{mixer_layer.1} parent=11 // pred_check
          %p350 = pneg %p132
        $region26: #{mixer_layer.1} parent=11 // pred_check_branch
          %352 = sbr.rel (%p350) target = $region28
        $region27: #{mixer_layer.1} parent=11 // pred_region
          _
        $region28: #{mixer_layer.1} parent=11 // pred_fallthru
          _
        // Predicated region
        $region29: #{mixer_layer.1} parent=11 // pred_check
          %p353 = pneg %p153
        $region30: #{mixer_layer.1} parent=11 // pred_check_branch
          %355 = sbr.rel (%p353) target = $region32
        $region31: #{mixer_layer.1} parent=11 // pred_region
          _
        $region32: #{mixer_layer.1} parent=11 // pred_fallthru
          _
        // Predicated region
        $region33: #{mixer_layer.1} parent=11 // pred_check
          %p356 = pneg %p174
        $region34: #{mixer_layer.1} parent=11 // pred_check_branch
          %358 = sbr.rel (%p356) target = $region36
        $region35: #{mixer_layer.1} parent=11 // pred_region
          _
        $region36: #{mixer_layer.1} parent=11 // pred_fallthru
          _
        // Predicated region
        $region37: #{mixer_layer.1} parent=11 // pred_check
          %p359 = pneg %p195
        $region38: #{mixer_layer.1} parent=11 // pred_check_branch
          %361 = sbr.rel (%p359) target = $region40
        $region39: #{mixer_layer.1} parent=11 // pred_region
          _
        $region40: #{mixer_layer.1} parent=11 // pred_fallthru
          _
        // Predicated region
        $region41: #{mixer_layer.1} parent=11 // pred_check
          %p362 = pneg %p216
        $region42: #{mixer_layer.1} parent=11 // pred_check_branch
          %364 = sbr.rel (%p362) target = $region44
        $region43: #{mixer_layer.1} parent=11 // pred_region
          _
        $region44: #{mixer_layer.1} parent=11 // pred_fallthru
          _
        // Predicated region
        $region45: #{mixer_layer.1} parent=11 // pred_check
          %p365 = pneg %p237
        $region46: #{mixer_layer.1} parent=11 // pred_check_branch
          %367 = sbr.rel (%p365) target = $region48
        $region47: #{mixer_layer.1} parent=11 // pred_region
          _
        $region48: #{mixer_layer.1} parent=11 // pred_fallthru
          _
        // Predicated region
        $region49: #{mixer_layer.1} parent=11 // pred_check
          %p368 = pneg %p258
        $region50: #{mixer_layer.1} parent=11 // pred_check_branch
          %370 = sbr.rel (%p368) target = $region52
        $region51: #{mixer_layer.1} parent=11 // pred_region
          _
        $region52: #{mixer_layer.1} parent=11 // pred_fallthru
          _
        // Predicated region
        $region53: #{mixer_layer.1} parent=11 // pred_check
          %p371 = pneg %p279
        $region54: #{mixer_layer.1} parent=11 // pred_check_branch
          %373 = sbr.rel (%p371) target = $region56
        $region55: #{mixer_layer.1} parent=11 // pred_region
          _
        $region56: #{mixer_layer.1} parent=11 // pred_fallthru
          _
        // Predicated region
        $region57: #{mixer_layer.1} parent=11 // pred_check
          %p374 = pneg %p300
        $region58: #{mixer_layer.1} parent=11 // pred_check_branch
          %376 = sbr.rel (%p374) target = $region60
        $region59: #{mixer_layer.1} parent=11 // pred_region
          _
        $region60: #{mixer_layer.1} parent=11 // pred_fallthru
          _
      $region12: #{mixer_layer.1} parent=5 // pred_fallthru
        _
      %p377 = scmp.lt.s32.totalorder %s22, 2
      // Predicated region
      $region61: #{mixer_layer.1} parent=5 // pred_check
        %p378 = pneg %p377
      $region62: #{mixer_layer.1} parent=5 // pred_check_branch
        %380 = sbr.rel (%p378) target = $region64
      $region63: #{mixer_layer.1} parent=5 // pred_region
        // Predicated region
        $region65: #{mixer_layer.1} parent=63 // pred_check
          %p381 = pneg %p42
        $region66: #{mixer_layer.1} parent=63 // pred_check_branch
          %383 = sbr.rel (%p381) target = $region68
        $region67: #{mixer_layer.1} parent=63 // pred_region
          %s384 = smul.u32 2, %s22
          %p385 = scmp.lt.s32.totalorder %s384, 3
          %s386 = scalar_select %p385, %s384, 3
          %s387 = smul.addr %s386, 8
          %s388 = scalar_lea.vmem %s0, %s387
          %s389 = smul.u32 2, %s22
        $region68: #{mixer_layer.1} parent=63 // pred_fallthru
          _
      $region64: #{mixer_layer.1} parent=5 // pred_fallthru
        _
      %p390 = scmp.le.s32.totalorder 1, %s22
      %p391 = scmp.lt.s32.totalorder %s22, 3
      %p392 = pnand %p390, %p391
      %p393 = pneg %p392
      // Predicated region
      $region69: #{mixer_layer.1} parent=5 // pred_check
        _
      $region70: #{mixer_layer.1} parent=5 // pred_check_branch
        %395 = sbr.rel (%p392) target = $region72
      $region71: #{mixer_layer.1} parent=5 // pred_region
        %s396 = ssub.s32 %s22, 1
        %s397 = smul.u32 2, %s27
        %p398 = scmp.lt.s32.totalorder %s397, 3
        %s399 = scalar_select %p398, %s397, 3
        %s400 = smul.addr %s399, 8
        %s401 = scalar_lea.vmem %s0, %s400
        %p402 = pneg %p48
        %p403 = pneg %p45
        %p404 = pneg %p69
        %p405 = pneg %p66
        %p406 = pneg %p90
        %p407 = pneg %p87
        %p408 = pneg %p111
        %p409 = pneg %p108
        %p410 = pneg %p132
        %p411 = pneg %p129
        %p412 = pneg %p153
        %p413 = pneg %p150
        %p414 = pneg %p174
        %p415 = pneg %p171
        %p416 = pneg %p195
        %p417 = pneg %p192
        %p418 = pneg %p216
        %p419 = pneg %p213
        %p420 = pneg %p237
        %p421 = pneg %p234
        %p422 = pneg %p258
        %p423 = pneg %p255
        %p424 = pneg %p279
        %p425 = pneg %p276
        %p426 = pneg %p300
        %p427 = pneg %p297
        %p428 = pneg %p326
        %p429 = pneg %p323
        %s430 = sand.u32 %s313, 1
        %s431 = scalar_lea.sflag [#allocation3], %s430
        %s432 = sand.u32 %s313, 1
        %s433 = smul.addr %s432, 16
        %s434 = scalar_lea.vmem [#allocation2], %s433
        %s435 = smul.u32 2, %s27
        %p436 = scmp.lt.s32.totalorder %s435, 3
        %s437 = scalar_select %p436, %s435, 3
        %s438 = smul.addr %s437, 8
        %s439 = scalar_lea.vmem %s0, %s438
        %s440 = smul.u32 2, %s27
        %s441 = smul.u32 2, %s27
        %v443 = vld [vmem:[%s439] sm:$0xff]
        %v444 = vld [vmem:[%s439 + $0x8] sm:$0xff]
        %vm445 = vcmask 261120
        %v446 = vsel %vm445, %v443, 0.0
        %v447 = vrot.slane %v446, 4
        %v448 = vadd.f32 %v446, %v447
        %v449 = vrot.slane %v448, 2
        %v450 = vadd.f32 %v448, %v449
        %v451 = vrot.slane %v450, 1
        %v452 = vadd.f32 %v450, %v451
        %v453 = vsel %vm445, %v444, 0.0
        %v454 = vrot.slane %v453, 4
        %v455 = vadd.f32 %v453, %v454
        %v456 = vrot.slane %v455, 2
        %v457 = vadd.f32 %v455, %v456
        %v458 = vrot.slane %v457, 1
        %v459 = vadd.f32 %v457, %v458
        %v460 = vrcp.pop 8.0
        %v461 = vmul.f32 8.0, %v460
        %v462 = vsub.f32 1.0, %v461
        %v463 = vmul.f32 %v460, %v462
        %v464 = vadd.f32 %v460, %v463
        %vm465 = vweird.f32 %v460
        %v466 = vsel %vm465, %v460, %v464
        %v467 = vmul.f32 %v452, %v466
        %v468 = vmul.f32 %v459, %v466
        %v469 = vmul.f32 %v443, %v443
        %v470 = vmul.f32 %v444, %v444
        %v471 = vsel %vm445, %v469, 0.0
        %v472 = vrot.slane %v471, 4
        %v473 = vadd.f32 %v471, %v472
        %v474 = vrot.slane %v473, 2
        %v475 = vadd.f32 %v473, %v474
        %v476 = vrot.slane %v475, 1
        %v477 = vadd.f32 %v475, %v476
        %v478 = vsel %vm445, %v470, 0.0
        %v479 = vrot.slane %v478, 4
        %v480 = vadd.f32 %v478, %v479
        %v481 = vrot.slane %v480, 2
        %v482 = vadd.f32 %v480, %v481
        %v483 = vrot.slane %v482, 1
        %v484 = vadd.f32 %v482, %v483
        %v485 = vmul.f32 %v477, %v466
        %v486 = vmul.f32 %v484, %v466
        %v487 = vmul.f32 %v467, %v467
        %v488 = vmul.f32 %v468, %v468
        %v489 = vsub.f32 %v485, %v487
        %v490 = vsub.f32 %v486, %v488
        %v491 = vsub.f32 %v443, %v467
        %v492 = vsub.f32 %v444, %v468
        %v493 = vadd.f32 %v489, 1e-05
        %v494 = vadd.f32 %v490, 1e-05
        %v495 = vrsqrt.pop %v493
        %v496 = vmul.f32 %v495, %v493
        %v497 = vmul.f32 %v496, %v495
        %v498 = vmul.f32 0.5, %v497
        %v499 = vsub.f32 1.5, %v498
        %v500 = vmul.f32 %v495, %v499
        %vm501 = vweird.f32 %v493
        %vm502 = vweird.f32 %v495
        %vm503 = vmor %vm501, %vm502
        %v504 = vsel %vm503, %v495, %v500
        %v505 = vrsqrt.pop %v494
        %v506 = vmul.f32 %v505, %v494
        %v507 = vmul.f32 %v506, %v505
        %v508 = vmul.f32 0.5, %v507
        %v509 = vsub.f32 1.5, %v508
        %v510 = vmul.f32 %v505, %v509
        %vm511 = vweird.f32 %v494
        %vm512 = vweird.f32 %v505
        %vm513 = vmor %vm511, %vm512
        %v514 = vsel %vm513, %v505, %v510
        %v515 = vmul.f32 %v491, %v504
        %v516 = vmul.f32 %v492, %v514
        %v517 = vld [vmem:[%s1] sm:$0xff]
        %519 = vset.pattern.permute.xlu0 0
        %520 = vperm.xlu0 %519, %v517
        %v521 = vpop.permute.xlu0 %520
        %v523 = vmul.f32 %v515, %v521
        %v524 = vmul.f32 %v516, %v521
        %v525 = vld [vmem:[%s2] sm:$0xff]
        %527 = vset.pattern.permute.xlu0 0
        %528 = vperm.xlu0 %527, %v525
        %v529 = vpop.permute.xlu0 %528
        %v531 = vadd.f32 %v523, %v529
        %v532 = vadd.f32 %v524, %v529
        %v533 = vpack.c.bf16 %v531, %v531
        %v534 = vpack.c.bf16 %v532, %v532
        %v535 = vld [vmem:[%s3] sm:$0xf]
        %v536 = vld [vmem:[%s4] sm:$0xff]
        %v537 = vld [vmem:[%s5] sm:$0xf]
        %v538 = vld [vmem:[%s6] sm:$0xff]
        %540 = vset.pattern.permute.xlu0 0
        %541 = vperm.xlu0 %540, %v536
        %v542 = vpop.permute.xlu0 %541
        %vm544 = vcmask 64512
        %v546 = vsel %vm544, %v535, 0
        %vm548 = vcmask 1043456
        %v550 = vsel %vm548, %v533, 0
        %552 = vmatpush.bf16.msra.mxu0 0
        %553 = vmatpush.bf16.msra.mxu0 0
        %554 = vmatpush.bf16.msra.mxu0 0
        %555 = vmatpush.bf16.msra.mxu0 0
        %556 = vmatpush.bf16.msra.mxu0 0
        %557 = vmatpush.bf16.msra.mxu0 0
        %558 = vmatpush.bf16.msra.mxu0 0
        %559 = vmatpush.bf16.msra.mxu0 %v550
        %560 = vmatmul.bf16.gmra.mxu0 %v546
        %v561 = vpop.f32.mrf.mxu0
        %v562 = vadd.f32 %v542, %v561
        %v563 = vpop.f32.mrf.mxu0
        %564 = vdwg.mxu0
        %v565 = vmul.f32 %v562, %v562
        %v566 = vmul.f32 %v562, %v565
        %v567 = vmul.f32 %v566, 0.044715
        %v568 = vadd.f32 %v562, %v567
        %v569 = vmul.f32 %v568, 0.7978846
        %v570 = vtanh.pop %v569
        %v571 = vadd.f32 %v570, 1.0
        %v572 = vmul.f32 %v571, 0.5
        %v573 = vmul.f32 %v562, %v572
        %v574 = vpack.c.bf16 %v573, %v573
        %576 = vset.pattern.permute.xlu0 0
        %577 = vperm.xlu0 %576, %v538
        %v578 = vpop.permute.xlu0 %577
        %v581 = vsel %vm544, %v537, 0
        %v584 = vsel %vm548, %v574, 0
        %586 = vmatpush.bf16.msra.mxu0 0
        %587 = vmatpush.bf16.msra.mxu0 0
        %588 = vmatpush.bf16.msra.mxu0 0
        %589 = vmatpush.bf16.msra.mxu0 0
        %590 = vmatpush.bf16.msra.mxu0 0
        %591 = vmatpush.bf16.msra.mxu0 0
        %592 = vmatpush.bf16.msra.mxu0 0
        %593 = vmatpush.bf16.msra.mxu0 %v584
        %594 = vmatmul.bf16.gmra.mxu0 %v581
        %v595 = vpop.f32.mrf.mxu0
        %v596 = vadd.f32 %v578, %v595
        %v597 = vpop.f32.mrf.mxu0
        %598 = vdwg.mxu0
        %v600 = vsel %vm548, %v534, 0
        %602 = vmatpush.bf16.msra.mxu0 0
        %603 = vmatpush.bf16.msra.mxu0 0
        %604 = vmatpush.bf16.msra.mxu0 0
        %605 = vmatpush.bf16.msra.mxu0 0
        %606 = vmatpush.bf16.msra.mxu0 0
        %607 = vmatpush.bf16.msra.mxu0 0
        %608 = vmatpush.bf16.msra.mxu0 0
        %609 = vmatpush.bf16.msra.mxu0 %v600
        %610 = vmatmul.bf16.gmra.mxu0 %v546
        %v611 = vpop.f32.mrf.mxu0
        %v612 = vadd.f32 %v542, %v611
        %v613 = vpop.f32.mrf.mxu0
        %614 = vdwg.mxu0
        %v615 = vmul.f32 %v612, %v612
        %v616 = vmul.f32 %v612, %v615
        %v617 = vmul.f32 %v616, 0.044715
        %v618 = vadd.f32 %v612, %v617
        %v619 = vmul.f32 %v618, 0.7978846
        %v620 = vtanh.pop %v619
        %v621 = vadd.f32 %v620, 1.0
        %v622 = vmul.f32 %v621, 0.5
        %v623 = vmul.f32 %v612, %v622
        %v624 = vpack.c.bf16 %v623, %v623
        %v626 = vsel %vm548, %v624, 0
        %628 = vmatpush.bf16.msra.mxu0 0
        %629 = vmatpush.bf16.msra.mxu0 0
        %630 = vmatpush.bf16.msra.mxu0 0
        %631 = vmatpush.bf16.msra.mxu0 0
        %632 = vmatpush.bf16.msra.mxu0 0
        %633 = vmatpush.bf16.msra.mxu0 0
        %634 = vmatpush.bf16.msra.mxu0 0
        %635 = vmatpush.bf16.msra.mxu0 %v626
        %636 = vmatmul.bf16.gmra.mxu0 %v581
        %v637 = vpop.f32.mrf.mxu0
        %v638 = vadd.f32 %v578, %v637
        %v639 = vpop.f32.mrf.mxu0
        %640 = vdwg.mxu0
        %v641 = vadd.f32 %v596, %v443
        %v642 = vadd.f32 %v638, %v444
        %v643 = vsel %vm445, %v641, 0.0
        %644 = vadd.xlane.f32.xlu0 %v643
        %v645 = vpop.xlane.xlu0 %644
        %v646 = vsel %vm445, %v642, 0.0
        %647 = vadd.xlane.f32.xlu0 %v646
        %v648 = vpop.xlane.xlu0 %647
        %v649 = vrcp.pop 32.0
        %v650 = vmul.f32 32.0, %v649
        %v651 = vsub.f32 1.0, %v650
        %v652 = vmul.f32 %v649, %v651
        %v653 = vadd.f32 %v649, %v652
        %vm654 = vweird.f32 %v649
        %v655 = vsel %vm654, %v649, %v653
        %v656 = vmul.f32 %v645, %v655
        %v657 = vmul.f32 %v648, %v655
        %v658 = vmul.f32 %v641, %v641
        %v659 = vmul.f32 %v642, %v642
        %v660 = vsel %vm445, %v658, 0.0
        %661 = vadd.xlane.f32.xlu0 %v660
        %v662 = vpop.xlane.xlu0 %661
        %v663 = vsel %vm445, %v659, 0.0
        %664 = vadd.xlane.f32.xlu0 %v663
        %v665 = vpop.xlane.xlu0 %664
        %v666 = vmul.f32 %v662, %v655
        %v667 = vmul.f32 %v665, %v655
        %v668 = vmul.f32 %v656, %v656
        %v669 = vmul.f32 %v657, %v657
        %v670 = vsub.f32 %v666, %v668
        %v671 = vsub.f32 %v667, %v669
        %v672 = vsub.f32 %v641, %v656
        %v673 = vsub.f32 %v642, %v657
        %v674 = vadd.f32 %v670, 1e-05
        %v675 = vadd.f32 %v671, 1e-05
        %v676 = vrsqrt.pop %v674
        %v677 = vmul.f32 %v676, %v674
        %v678 = vmul.f32 %v677, %v676
        %v679 = vmul.f32 0.5, %v678
        %v680 = vsub.f32 1.5, %v679
        %v681 = vmul.f32 %v676, %v680
        %vm682 = vweird.f32 %v674
        %vm683 = vweird.f32 %v676
        %vm684 = vmor %vm682, %vm683
        %v685 = vsel %vm684, %v676, %v681
        %v686 = vrsqrt.pop %v675
        %v687 = vmul.f32 %v686, %v675
        %v688 = vmul.f32 %v687, %v686
        %v689 = vmul.f32 0.5, %v688
        %v690 = vsub.f32 1.5, %v689
        %v691 = vmul.f32 %v686, %v690
        %vm692 = vweird.f32 %v675
        %vm693 = vweird.f32 %v686
        %vm694 = vmor %vm692, %vm693
        %v695 = vsel %vm694, %v686, %v691
        %v696 = vmul.f32 %v672, %v685
        %v697 = vmul.f32 %v673, %v695
        %v698 = vld [vmem:[%s7] sm:$0x1]
        %v700 = vperm.slane %v698, 0
        %v702 = vmul.f32 %v696, %v700
        %v703 = vmul.f32 %v697, %v700
        %v704 = vld [vmem:[%s8] sm:$0x1]
        %v706 = vperm.slane %v704, 0
        %v708 = vadd.f32 %v702, %v706
        %v709 = vadd.f32 %v703, %v706
        %v710 = vpack.c.bf16 %v709, %v708
        %v711 = vld [vmem:[%s9] sm:$0xf]
        %v712 = vld [vmem:[%s9 + $0x4] sm:$0xf]
        %v713 = vld [vmem:[%s9 + $0x8] sm:$0xf]
        %v714 = vld [vmem:[%s9 + $0xc] sm:$0xf]
        %v715 = vld [vmem:[%s10] sm:$0x1]
        %v717 = vperm.slane %v715, 0
        %v723 = vunpack.c.l.b16 %v711
        %v724 = vunpack.c.l.b16 %v712
        %v725 = vunpack.c.l.b16 %v713
        %v726 = vunpack.c.l.b16 %v714
        %v727 = vpack.c.b16 %v724, %v723
        %v728 = vpack.c.b16 %v726, %v725
        %v732 = vsel %vm445, %v710, 0
        %734 = vmatpush.bf16.msra.mxu0 0
        %735 = vmatpush.bf16.msra.mxu0 0
        %736 = vmatpush.bf16.msra.mxu0 0
        %737 = vmatpush.bf16.msra.mxu0 0
        %738 = vmatpush.bf16.msra.mxu0 0
        %739 = vmatpush.bf16.msra.mxu0 0
        %740 = vmatpush.bf16.msra.mxu0 %v728
        %741 = vmatpush.bf16.msra.mxu0 %v727
        %742 = vmatmul.bf16.gmra.mxu0 %v732
        %v743 = vpop.f32.mrf.mxu0
        %v744 = vadd.f32 %v717, %v743
        %v745 = vpop.f32.mrf.mxu0
        %v746 = vadd.f32 %v717, %v745
        %747 = vdwg.mxu0
        %v748 = vmul.f32 %v744, %v744
        %v749 = vmul.f32 %v746, %v746
        %v750 = vmul.f32 %v744, %v748
        %v751 = vmul.f32 %v746, %v749
        %v752 = vmul.f32 %v750, 0.044715
        %v753 = vmul.f32 %v751, 0.044715
        %v754 = vadd.f32 %v744, %v752
        %v755 = vadd.f32 %v746, %v753
        %v756 = vmul.f32 %v754, 0.7978846
        %v757 = vmul.f32 %v755, 0.7978846
        %v758 = vtanh.pop %v756
        %v759 = vtanh.pop %v757
        %v760 = vadd.f32 %v758, 1.0
        %v761 = vadd.f32 %v759, 1.0
        %v762 = vmul.f32 %v760, 0.5
        %v763 = vmul.f32 %v761, 0.5
        %v764 = vmul.f32 %v744, %v762
        %v765 = vmul.f32 %v746, %v763
        %v766 = vpack.c.bf16 %v765, %v764
        %v767 = vld [vmem:[%s11] sm:$0xf]
        %v768 = vld [vmem:[%s11 + $0x4] sm:$0xf]
        %v769 = vld [vmem:[%s11 + $0x8] sm:$0xf]
        %v770 = vld [vmem:[%s11 + $0xc] sm:$0xf]
        %v771 = vld [vmem:[%s12] sm:$0x1]
        %v773 = vperm.slane %v771, 0
        %v779 = vunpack.c.l.b16 %v767
        %v780 = vunpack.c.l.b16 %v768
        %v781 = vunpack.c.l.b16 %v769
        %v782 = vunpack.c.l.b16 %v770
        %v783 = vpack.c.b16 %v780, %v779
        %v784 = vpack.c.b16 %v782, %v781
        %v788 = vsel %vm445, %v766, 0
        %790 = vmatpush.bf16.msra.mxu0 0
        %791 = vmatpush.bf16.msra.mxu0 0
        %792 = vmatpush.bf16.msra.mxu0 0
        %793 = vmatpush.bf16.msra.mxu0 0
        %794 = vmatpush.bf16.msra.mxu0 0
        %795 = vmatpush.bf16.msra.mxu0 0
        %796 = vmatpush.bf16.msra.mxu0 %v784
        %797 = vmatpush.bf16.msra.mxu0 %v783
        %798 = vmatmul.bf16.gmra.mxu0 %v788
        %v799 = vpop.f32.mrf.mxu0
        %v800 = vadd.f32 %v773, %v799
        %v801 = vpop.f32.mrf.mxu0
        %v802 = vadd.f32 %v773, %v801
        %803 = vdwg.mxu0
        %v804 = vadd.f32 %v800, %v641
        %v805 = vadd.f32 %v802, %v642
        %806 = vst.msk [vmem:[%s434] sm:$0xff] %vm445, %v804
        %807 = vst.msk [vmem:[%s434 + $0x8] sm:$0xff] %vm445, %v805
        %s808 = sand.u32 %s313, 1
        %s809 = scalar_lea.sflag [#allocation3], %s808
        %s810 = sand.u32 %s313, 1
        %s811 = smul.addr %s810, 16
        %s812 = scalar_lea.vmem [#allocation2], %s811
        // Predicated region
        $region73: #{mixer_layer.1} parent=71 // pred_check
          %p813 = pneg %p323
        $region74: #{mixer_layer.1} parent=71 // pred_check_branch
          %815 = sbr.rel (%p813) target = $region76
        $region75: #{mixer_layer.1} parent=71 // pred_region
          %s816 = smul.u32 2, %s27
          %818 = vsyncadd %s809, 0
          %s819 = smul.addr %s816, 8
          %s820 = scalar_lea.hbm %s13, %s819
          %s821 = sshll.u32 %s812, 4
          %s822 = int_to_ptr.vmem [resolvable:$true] %s821
          %s823 = sshll.u32 %s820, 4
          %s824 = int_to_ptr.hbm [resolvable:$true] %s823
          %829 = dma.vmem_to_hbm [thread:$0]  %s822, 256, %s824, %s809, 128, 128, 8
        $region76: #{mixer_layer.1} parent=71 // pred_fallthru
          _
      $region72: #{mixer_layer.1} parent=5 // pred_fallthru
        _
      %p830 = scmp.le.s32.totalorder 2, %s22
      // Predicated region
      $region77: #{mixer_layer.1} parent=5 // pred_check
        %p831 = pneg %p830
      $region78: #{mixer_layer.1} parent=5 // pred_check_branch
        %833 = sbr.rel (%p831) target = $region80
      $region79: #{mixer_layer.1} parent=5 // pred_region
        %s834 = ssub.s32 %s22, 2
        // Predicated region
        $region81: #{mixer_layer.1} parent=79 // pred_check
          %p835 = pneg %p329
        $region82: #{mixer_layer.1} parent=79 // pred_check_branch
          %837 = sbr.rel (%p835) target = $region84
        $region83: #{mixer_layer.1} parent=79 // pred_region
          %s838 = sand.u32 %s314, 1
          %s839 = scalar_lea.sflag [#allocation3], %s838
          %s840 = sand.u32 %s314, 1
          %s841 = smul.addr %s840, 16
          %s842 = scalar_lea.vmem [#allocation2], %s841
          %844 = dma.done %s839, 256
        $region84: #{mixer_layer.1} parent=79 // pred_fallthru
          _
      $region80: #{mixer_layer.1} parent=5 // pred_fallthru
        _
    $region6: #{mixer_layer.1} parent=1 // loop_footer
      %s26 = sadd.s32 1, %s22
    $region7: #{mixer_layer.1} parent=1 // loop_footer_branch
      %21 = sbr.rel target = $region3
    $region8: #{mixer_layer.1} parent=1 // loop_exit
      _
    %845 = vsyncpa [#allocation3], 1
    %s846 = scalar_lea.sflag [#allocation3], 1
    %847 = vsyncpa %s846, 1

// kernel: mixer_layer.1
$region0: #{mixer_layer.1}
  #allocation0 [shape = 'u32[]', space=smem, size = 0x4, offset = 0x4, fixed_abs, tag = 'smem constant byte address 0x4 - core index']
  #allocation1 [shape = 'u32[72,128]{1,0:T(1,128)}', space=vmem, size = 0x9000, scoped, tag = 'internal scratch']
  %s0 = inlined_call_operand.vmem [shape: f32[4,8,32], index: 0, kind: input, shape index: {}]
  %s1 = inlined_call_operand.vmem [shape: f32[8,1], index: 1, kind: input, shape index: {}]
  %s2 = inlined_call_operand.vmem [shape: f32[8,1], index: 2, kind: input, shape index: {}]
  %s3 = inlined_call_operand.vmem [shape: bf16[8,8], index: 3, kind: input, shape index: {}]
  %s4 = inlined_call_operand.vmem [shape: f32[8,1], index: 4, kind: input, shape index: {}]
  %s5 = inlined_call_operand.vmem [shape: bf16[8,8], index: 5, kind: input, shape index: {}]
  %s6 = inlined_call_operand.vmem [shape: f32[8,1], index: 6, kind: input, shape index: {}]
  %s7 = inlined_call_operand.vmem [shape: f32[1,32], index: 7, kind: input, shape index: {}]
  %s8 = inlined_call_operand.vmem [shape: f32[1,32], index: 8, kind: input, shape index: {}]
  %s9 = inlined_call_operand.vmem [shape: bf16[32,32], index: 9, kind: input, shape index: {}]
  %s10 = inlined_call_operand.vmem [shape: f32[1,32], index: 10, kind: input, shape index: {}]
  %s11 = inlined_call_operand.vmem [shape: bf16[32,32], index: 11, kind: input, shape index: {}]
  %s12 = inlined_call_operand.vmem [shape: f32[1,32], index: 12, kind: input, shape index: {}]
  %s13 = inlined_call_operand.hbm [shape: f32[4,8,32], index: 13, kind: output, shape index: {}]
  %s14 = sld [smem:[#allocation0]]
  $region85: #{mixer_layer.1} parent=0
    _
  %s16 = ssub.s32 1, %s14
  %s17 = scalar_select 0, %s16, %s14
  $region1: #{mixer_layer.1} parent=0
    #allocation2 [shape = 'u8[16384]{0}', space=vmem, size = 0x4000, scoped, tag = 'output window, operand 0']
    #allocation3 [shape = 's32[2]{0}', space=sflag, size = 0x8, scoped, tag = 'scoped memory for mixer_layer.1']
    %18 = vsyncpa [#allocation3], 0
    %s19 = scalar_lea.sflag [#allocation3], 1
    %20 = vsyncpa %s19, 0
    loop: start=0, step=1, limit=4
    $region2: #{mixer_layer.1} parent=1 // loop_pre_header
      _
    $region3: #{mixer_layer.1} parent=1 // loop_header
      %s22 = sphi 0, %s26
      %p23 = scmp.ge.s32.totalorder %s22, 4
      %s32 = sphi 0, %s34
      %s35 = sphi 0, %s32
      %s36 = sphi 0, %s35
      %s52 = sphi 0, %s36
      %s56 = sphi 0, %s56
      %s58 = sphi 0, %s56
      %s59 = sphi 0, %s58
      %s73 = sphi 0, %s59
      %s77 = sphi 0, %s77
      %s79 = sphi 0, %s77
      %s80 = sphi 0, %s79
      %s94 = sphi 0, %s80
      %s98 = sphi 0, %s98
      %s100 = sphi 0, %s98
      %s101 = sphi 0, %s100
      %s115 = sphi 0, %s101
      %s119 = sphi 0, %s119
      %s121 = sphi 0, %s119
      %s122 = sphi 0, %s121
      %s136 = sphi 0, %s122
      %s140 = sphi 0, %s140
      %s142 = sphi 0, %s140
      %s143 = sphi 0, %s142
      %s157 = sphi 0, %s143
      %s161 = sphi 0, %s161
      %s163 = sphi 0, %s161
      %s164 = sphi 0, %s163
      %s178 = sphi 0, %s164
      %s182 = sphi 0, %s182
      %s184 = sphi 0, %s182
      %s185 = sphi 0, %s184
      %s199 = sphi 0, %s185
      %s203 = sphi 0, %s203
      %s205 = sphi 0, %s203
      %s206 = sphi 0, %s205
      %s220 = sphi 0, %s206
      %s224 = sphi 0, %s224
      %s226 = sphi 0, %s224
      %s227 = sphi 0, %s226
      %s241 = sphi 0, %s227
      %s245 = sphi 0, %s245
      %s247 = sphi 0, %s245
      %s248 = sphi 0, %s247
      %s262 = sphi 0, %s248
      %s266 = sphi 0, %s266
      %s268 = sphi 0, %s266
      %s269 = sphi 0, %s268
      %s283 = sphi 0, %s269
      %s287 = sphi 0, %s287
      %s289 = sphi 0, %s287
      %s290 = sphi 0, %s289
      %s304 = sphi 0, %s290
      %s310 = sphi 0, %s312
      %s313 = sphi 0, %s310
      %s314 = sphi 0, %s313
      %s330 = sphi 0, %s314
    $region4: #{mixer_layer.1} parent=1 // loop_header_branch
      %25 = sbr.rel (%p23) target = $region8
    $region5: #{mixer_layer.1} parent=1 // loop_body
      %s27 = ssub.s32 %s22, 1
      %s28 = ssub.s32 %s22, 2
      %s29 = sadd.s32 %s22, 1
      %s30 = ssub.s32 %s22, %s29
      %p31 = scmp.eq.s32.totalorder %s30, 0
      %s33 = sadd.s32 %s32, 1
      %s34 = scalar_select %p31, %s32, %s33
      %p37 = pneg %p31
      %p38 = scmp.eq.s32.totalorder %s22, 1
      %p39 = por %p37, %p38
      %p40 = scmp.ne.s32.totalorder %s32, %s35
      %p41 = scmp.eq.s32.totalorder %s22, 0
      %p42 = por %p40, %p41
      %p43 = scmp.ne.s32.totalorder %s32, %s35
      %p44 = scmp.eq.s32.totalorder %s27, 1
      %p45 = por %p43, %p44
      %p46 = scmp.ne.s32.totalorder %s35, %s36
      %p47 = scmp.eq.s32.totalorder %s27, 0
      %p48 = por %p46, %p47
      %p49 = scmp.ne.s32.totalorder %s35, %s36
      %p50 = scmp.eq.s32.totalorder %s28, 1
      %p51 = por %p49, %p50
      %p53 = scmp.ne.s32.totalorder %s36, %s52
      %p54 = scmp.eq.s32.totalorder %s28, 0
      %p55 = por %p53, %p54
      %s57 = sadd.s32 %s56, 1
      %p60 = scmp.eq.s32.totalorder %s22, 1
      %p61 = scmp.ne.s32.totalorder %s56, %s58
      %p62 = scmp.eq.s32.totalorder %s22, 0
      %p63 = por %p61, %p62
      %p64 = scmp.ne.s32.totalorder %s56, %s58
      %p65 = scmp.eq.s32.totalorder %s27, 1
      %p66 = por %p64, %p65
      %p67 = scmp.ne.s32.totalorder %s58, %s59
      %p68 = scmp.eq.s32.totalorder %s27, 0
      %p69 = por %p67, %p68
      %p70 = scmp.ne.s32.totalorder %s58, %s59
      %p71 = scmp.eq.s32.totalorder %s28, 1
      %p72 = por %p70, %p71
      %p74 = scmp.ne.s32.totalorder %s59, %s73
      %p75 = scmp.eq.s32.totalorder %s28, 0
      %p76 = por %p74, %p75
      %s78 = sadd.s32 %s77, 1
      %p81 = scmp.eq.s32.totalorder %s22, 1
      %p82 = scmp.ne.s32.totalorder %s77, %s79
      %p83 = scmp.eq.s32.totalorder %s22, 0
      %p84 = por %p82, %p83
      %p85 = scmp.ne.s32.totalorder %s77, %s79
      %p86 = scmp.eq.s32.totalorder %s27, 1
      %p87 = por %p85, %p86
      %p88 = scmp.ne.s32.totalorder %s79, %s80
      %p89 = scmp.eq.s32.totalorder %s27, 0
      %p90 = por %p88, %p89
      %p91 = scmp.ne.s32.totalorder %s79, %s80
      %p92 = scmp.eq.s32.totalorder %s28, 1
      %p93 = por %p91, %p92
      %p95 = scmp.ne.s32.totalorder %s80, %s94
      %p96 = scmp.eq.s32.totalorder %s28, 0
      %p97 = por %p95, %p96
      %s99 = sadd.s32 %s98, 1
      %p102 = scmp.eq.s32.totalorder %s22, 1
      %p103 = scmp.ne.s32.totalorder %s98, %s100
      %p104 = scmp.eq.s32.totalorder %s22, 0
      %p105 = por %p103, %p104
      %p106 = scmp.ne.s32.totalorder %s98, %s100
      %p107 = scmp.eq.s32.totalorder %s27, 1
      %p108 = por %p106, %p107
      %p109 = scmp.ne.s32.totalorder %s100, %s101
      %p110 = scmp.eq.s32.totalorder %s27, 0
      %p111 = por %p109, %p110
      %p112 = scmp.ne.s32.totalorder %s100, %s101
      %p113 = scmp.eq.s32.totalorder %s28, 1
      %p114 = por %p112, %p113
      %p116 = scmp.ne.s32.totalorder %s101, %s115
      %p117 = scmp.eq.s32.totalorder %s28, 0
      %p118 = por %p116, %p117
      %s120 = sadd.s32 %s119, 1
      %p123 = scmp.eq.s32.totalorder %s22, 1
      %p124 = scmp.ne.s32.totalorder %s119, %s121
      %p125 = scmp.eq.s32.totalorder %s22, 0
      %p126 = por %p124, %p125
      %p127 = scmp.ne.s32.totalorder %s119, %s121
      %p128 = scmp.eq.s32.totalorder %s27, 1
      %p129 = por %p127, %p128
      %p130 = scmp.ne.s32.totalorder %s121, %s122
      %p131 = scmp.eq.s32.totalorder %s27, 0
      %p132 = por %p130, %p131
      %p133 = scmp.ne.s32.totalorder %s121, %s122
      %p134 = scmp.eq.s32.totalorder %s28, 1
      %p135 = por %p133, %p134
      %p137 = scmp.ne.s32.totalorder %s122, %s136
      %p138 = scmp.eq.s32.totalorder %s28, 0
      %p139 = por %p137, %p138
      %s141 = sadd.s32 %s140, 1
      %p144 = scmp.eq.s32.totalorder %s22, 1
      %p145 = scmp.ne.s32.totalorder %s140, %s142
      %p146 = scmp.eq.s32.totalorder %s22, 0
      %p147 = por %p145, %p146
      %p148 = scmp.ne.s32.totalorder %s140, %s142
      %p149 = scmp.eq.s32.totalorder %s27, 1
      %p150 = por %p148, %p149
      %p151 = scmp.ne.s32.totalorder %s142, %s143
      %p152 = scmp.eq.s32.totalorder %s27, 0
      %p153 = por %p151, %p152
      %p154 = scmp.ne.s32.totalorder %s142, %s143
      %p155 = scmp.eq.s32.totalorder %s28, 1
      %p156 = por %p154, %p155
      %p158 = scmp.ne.s32.totalorder %s143, %s157
      %p159 = scmp.eq.s32.totalorder %s28, 0
      %p160 = por %p158, %p159
      %s162 = sadd.s32 %s161, 1
      %p165 = scmp.eq.s32.totalorder %s22, 1
      %p166 = scmp.ne.s32.totalorder %s161, %s163
      %p167 = scmp.eq.s32.totalorder %s22, 0
      %p168 = por %p166, %p167
      %p169 = scmp.ne.s32.totalorder %s161, %s163
      %p170 = scmp.eq.s32.totalorder %s27, 1
      %p171 = por %p169, %p170
      %p172 = scmp.ne.s32.totalorder %s163, %s164
      %p173 = scmp.eq.s32.totalorder %s27, 0
      %p174 = por %p172, %p173
      %p175 = scmp.ne.s32.totalorder %s163, %s164
      %p176 = scmp.eq.s32.totalorder %s28, 1
      %p177 = por %p175, %p176
      %p179 = scmp.ne.s32.totalorder %s164, %s178
      %p180 = scmp.eq.s32.totalorder %s28, 0
      %p181 = por %p179, %p180
      %s183 = sadd.s32 %s182, 1
      %p186 = scmp.eq.s32.totalorder %s22, 1
      %p187 = scmp.ne.s32.totalorder %s182, %s184
      %p188 = scmp.eq.s32.totalorder %s22, 0
      %p189 = por %p187, %p188
      %p190 = scmp.ne.s32.totalorder %s182, %s184
      %p191 = scmp.eq.s32.totalorder %s27, 1
      %p192 = por %p190, %p191
      %p193 = scmp.ne.s32.totalorder %s184, %s185
      %p194 = scmp.eq.s32.totalorder %s27, 0
      %p195 = por %p193, %p194
      %p196 = scmp.ne.s32.totalorder %s184, %s185
      %p197 = scmp.eq.s32.totalorder %s28, 1
      %p198 = por %p196, %p197
      %p200 = scmp.ne.s32.totalorder %s185, %s199
      %p201 = scmp.eq.s32.totalorder %s28, 0
      %p202 = por %p200, %p201
      %s204 = sadd.s32 %s203, 1
      %p207 = scmp.eq.s32.totalorder %s22, 1
      %p208 = scmp.ne.s32.totalorder %s203, %s205
      %p209 = scmp.eq.s32.totalorder %s22, 0
      %p210 = por %p208, %p209
      %p211 = scmp.ne.s32.totalorder %s203, %s205
      %p212 = scmp.eq.s32.totalorder %s27, 1
      %p213 = por %p211, %p212
      %p214 = scmp.ne.s32.totalorder %s205, %s206
      %p215 = scmp.eq.s32.totalorder %s27, 0
      %p216 = por %p214, %p215
      %p217 = scmp.ne.s32.totalorder %s205, %s206
      %p218 = scmp.eq.s32.totalorder %s28, 1
      %p219 = por %p217, %p218
      %p221 = scmp.ne.s32.totalorder %s206, %s220
      %p222 = scmp.eq.s32.totalorder %s28, 0
      %p223 = por %p221, %p222
      %s225 = sadd.s32 %s224, 1
      %p228 = scmp.eq.s32.totalorder %s22, 1
      %p229 = scmp.ne.s32.totalorder %s224, %s226
      %p230 = scmp.eq.s32.totalorder %s22, 0
      %p231 = por %p229, %p230
      %p232 = scmp.ne.s32.totalorder %s224, %s226
      %p233 = scmp.eq.s32.totalorder %s27, 1
      %p234 = por %p232, %p233
      %p235 = scmp.ne.s32.totalorder %s226, %s227
      %p236 = scmp.eq.s32.totalorder %s27, 0
      %p237 = por %p235, %p236
      %p238 = scmp.ne.s32.totalorder %s226, %s227
      %p239 = scmp.eq.s32.totalorder %s28, 1
      %p240 = por %p238, %p239
      %p242 = scmp.ne.s32.totalorder %s227, %s241
      %p243 = scmp.eq.s32.totalorder %s28, 0
      %p244 = por %p242, %p243
      %s246 = sadd.s32 %s245, 1
      %p249 = scmp.eq.s32.totalorder %s22, 1
      %p250 = scmp.ne.s32.totalorder %s245, %s247
      %p251 = scmp.eq.s32.totalorder %s22, 0
      %p252 = por %p250, %p251
      %p253 = scmp.ne.s32.totalorder %s245, %s247
      %p254 = scmp.eq.s32.totalorder %s27, 1
      %p255 = por %p253, %p254
      %p256 = scmp.ne.s32.totalorder %s247, %s248
      %p257 = scmp.eq.s32.totalorder %s27, 0
      %p258 = por %p256, %p257
      %p259 = scmp.ne.s32.totalorder %s247, %s248
      %p260 = scmp.eq.s32.totalorder %s28, 1
      %p261 = por %p259, %p260
      %p263 = scmp.ne.s32.totalorder %s248, %s262
      %p264 = scmp.eq.s32.totalorder %s28, 0
      %p265 = por %p263, %p264
      %s267 = sadd.s32 %s266, 1
      %p270 = scmp.eq.s32.totalorder %s22, 1
      %p271 = scmp.ne.s32.totalorder %s266, %s268
      %p272 = scmp.eq.s32.totalorder %s22, 0
      %p273 = por %p271, %p272
      %p274 = scmp.ne.s32.totalorder %s266, %s268
      %p275 = scmp.eq.s32.totalorder %s27, 1
      %p276 = por %p274, %p275
      %p277 = scmp.ne.s32.totalorder %s268, %s269
      %p278 = scmp.eq.s32.totalorder %s27, 0
      %p279 = por %p277, %p278
      %p280 = scmp.ne.s32.totalorder %s268, %s269
      %p281 = scmp.eq.s32.totalorder %s28, 1
      %p282 = por %p280, %p281
      %p284 = scmp.ne.s32.totalorder %s269, %s283
      %p285 = scmp.eq.s32.totalorder %s28, 0
      %p286 = por %p284, %p285
      %s288 = sadd.s32 %s287, 1
      %p291 = scmp.eq.s32.totalorder %s22, 1
      %p292 = scmp.ne.s32.totalorder %s287, %s289
      %p293 = scmp.eq.s32.totalorder %s22, 0
      %p294 = por %p292, %p293
      %p295 = scmp.ne.s32.totalorder %s287, %s289
      %p296 = scmp.eq.s32.totalorder %s27, 1
      %p297 = por %p295, %p296
      %p298 = scmp.ne.s32.totalorder %s289, %s290
      %p299 = scmp.eq.s32.totalorder %s27, 0
      %p300 = por %p298, %p299
      %p301 = scmp.ne.s32.totalorder %s289, %s290
      %p302 = scmp.eq.s32.totalorder %s28, 1
      %p303 = por %p301, %p302
      %p305 = scmp.ne.s32.totalorder %s290, %s304
      %p306 = scmp.eq.s32.totalorder %s28, 0
      %p307 = por %p305, %p306
      %s308 = ssub.s32 %s22, %s29
      %p309 = scmp.eq.s32.totalorder %s308, 0
      %s311 = sadd.s32 %s310, 1
      %s312 = scalar_select %p309, %s310, %s311
      %p315 = pneg %p309
      %p316 = scmp.eq.s32.totalorder %s22, 1
      %p317 = por %p315, %p316
      %p318 = scmp.ne.s32.totalorder %s310, %s313
      %p319 = scmp.eq.s32.totalorder %s22, 0
      %p320 = por %p318, %p319
      %p321 = scmp.ne.s32.totalorder %s310, %s313
      %p322 = scmp.eq.s32.totalorder %s27, 1
      %p323 = por %p321, %p322
      %p324 = scmp.ne.s32.totalorder %s313, %s314
      %p325 = scmp.eq.s32.totalorder %s27, 0
      %p326 = por %p324, %p325
      %p327 = scmp.ne.s32.totalorder %s313, %s314
      %p328 = scmp.eq.s32.totalorder %s28, 1
      %p329 = por %p327, %p328
      %p331 = scmp.ne.s32.totalorder %s314, %s330
      %p332 = scmp.eq.s32.totalorder %s28, 0
      %p333 = por %p331, %p332
      %p334 = scmp.le.s32.totalorder 1, %s22
      %p335 = scmp.lt.s32.totalorder %s22, 3
      %p336 = pnand %p334, %p335
      %p337 = pneg %p336
      // Predicated region
      $region9: #{mixer_layer.1} parent=5 // pred_check
        _
      $region10: #{mixer_layer.1} parent=5 // pred_check_branch
        %339 = sbr.rel (%p336) target = $region12
      $region11: #{mixer_layer.1} parent=5 // pred_region
        %s340 = ssub.s32 %s22, 1
        // Predicated region
        $region13: #{mixer_layer.1} parent=11 // pred_check
          %p341 = pneg %p69
        $region14: #{mixer_layer.1} parent=11 // pred_check_branch
          %343 = sbr.rel (%p341) target = $region16
        $region15: #{mixer_layer.1} parent=11 // pred_region
          _
        $region16: #{mixer_layer.1} parent=11 // pred_fallthru
          _
        // Predicated region
        $region17: #{mixer_layer.1} parent=11 // pred_check
          %p344 = pneg %p90
        $region18: #{mixer_layer.1} parent=11 // pred_check_branch
          %346 = sbr.rel (%p344) target = $region20
        $region19: #{mixer_layer.1} parent=11 // pred_region
          _
        $region20: #{mixer_layer.1} parent=11 // pred_fallthru
          _
        // Predicated region
        $region21: #{mixer_layer.1} parent=11 // pred_check
          %p347 = pneg %p111
        $region22: #{mixer_layer.1} parent=11 // pred_check_branch
          %349 = sbr.rel (%p347) target = $region24
        $region23: #{mixer_layer.1} parent=11 // pred_region
          _
        $region24: #{mixer_layer.1} parent=11 // pred_fallthru
          _
        // Predicated region
        $region25: #{mixer_layer.1} parent=11 // pred_check
          %p350 = pneg %p132
        $region26: #{mixer_layer.1} parent=11 // pred_check_branch
          %352 = sbr.rel (%p350) target = $region28
        $region27: #{mixer_layer.1} parent=11 // pred_region
          _
        $region28: #{mixer_layer.1} parent=11 // pred_fallthru
          _
        // Predicated region
        $region29: #{mixer_layer.1} parent=11 // pred_check
          %p353 = pneg %p153
        $region30: #{mixer_layer.1} parent=11 // pred_check_branch
          %355 = sbr.rel (%p353) target = $region32
        $region31: #{mixer_layer.1} parent=11 // pred_region
          _
        $region32: #{mixer_layer.1} parent=11 // pred_fallthru
          _
        // Predicated region
        $region33: #{mixer_layer.1} parent=11 // pred_check
          %p356 = pneg %p174
        $region34: #{mixer_layer.1} parent=11 // pred_check_branch
          %358 = sbr.rel (%p356) target = $region36
        $region35: #{mixer_layer.1} parent=11 // pred_region
          _
        $region36: #{mixer_layer.1} parent=11 // pred_fallthru
          _
        // Predicated region
        $region37: #{mixer_layer.1} parent=11 // pred_check
          %p359 = pneg %p195
        $region38: #{mixer_layer.1} parent=11 // pred_check_branch
          %361 = sbr.rel (%p359) target = $region40
        $region39: #{mixer_layer.1} parent=11 // pred_region
          _
        $region40: #{mixer_layer.1} parent=11 // pred_fallthru
          _
        // Predicated region
        $region41: #{mixer_layer.1} parent=11 // pred_check
          %p362 = pneg %p216
        $region42: #{mixer_layer.1} parent=11 // pred_check_branch
          %364 = sbr.rel (%p362) target = $region44
        $region43: #{mixer_layer.1} parent=11 // pred_region
          _
        $region44: #{mixer_layer.1} parent=11 // pred_fallthru
          _
        // Predicated region
        $region45: #{mixer_layer.1} parent=11 // pred_check
          %p365 = pneg %p237
        $region46: #{mixer_layer.1} parent=11 // pred_check_branch
          %367 = sbr.rel (%p365) target = $region48
        $region47: #{mixer_layer.1} parent=11 // pred_region
          _
        $region48: #{mixer_layer.1} parent=11 // pred_fallthru
          _
        // Predicated region
        $region49: #{mixer_layer.1} parent=11 // pred_check
          %p368 = pneg %p258
        $region50: #{mixer_layer.1} parent=11 // pred_check_branch
          %370 = sbr.rel (%p368) target = $region52
        $region51: #{mixer_layer.1} parent=11 // pred_region
          _
        $region52: #{mixer_layer.1} parent=11 // pred_fallthru
          _
        // Predicated region
        $region53: #{mixer_layer.1} parent=11 // pred_check
          %p371 = pneg %p279
        $region54: #{mixer_layer.1} parent=11 // pred_check_branch
          %373 = sbr.rel (%p371) target = $region56
        $region55: #{mixer_layer.1} parent=11 // pred_region
          _
        $region56: #{mixer_layer.1} parent=11 // pred_fallthru
          _
        // Predicated region
        $region57: #{mixer_layer.1} parent=11 // pred_check
          %p374 = pneg %p300
        $region58: #{mixer_layer.1} parent=11 // pred_check_branch
          %376 = sbr.rel (%p374) target = $region60
        $region59: #{mixer_layer.1} parent=11 // pred_region
          _
        $region60: #{mixer_layer.1} parent=11 // pred_fallthru
          _
      $region12: #{mixer_layer.1} parent=5 // pred_fallthru
        _
      %p377 = scmp.lt.s32.totalorder %s22, 2
      // Predicated region
      $region61: #{mixer_layer.1} parent=5 // pred_check
        %p378 = pneg %p377
      $region62: #{mixer_layer.1} parent=5 // pred_check_branch
        %380 = sbr.rel (%p378) target = $region64
      $region63: #{mixer_layer.1} parent=5 // pred_region
        // Predicated region
        $region65: #{mixer_layer.1} parent=63 // pred_check
          %p381 = pneg %p42
        $region66: #{mixer_layer.1} parent=63 // pred_check_branch
          %383 = sbr.rel (%p381) target = $region68
        $region67: #{mixer_layer.1} parent=63 // pred_region
          %s384 = smul.u32 2, %s22
          %p385 = scmp.lt.s32.totalorder %s384, 3
          %s386 = scalar_select %p385, %s384, 3
          %s387 = smul.addr %s386, 8
          %s388 = scalar_lea.vmem %s0, %s387
          %s389 = smul.u32 2, %s22
        $region68: #{mixer_layer.1} parent=63 // pred_fallthru
          _
      $region64: #{mixer_layer.1} parent=5 // pred_fallthru
        _
      %p390 = scmp.le.s32.totalorder 1, %s22
      %p391 = scmp.lt.s32.totalorder %s22, 3
      %p392 = pnand %p390, %p391
      %p393 = pneg %p392
      // Predicated region
      $region69: #{mixer_layer.1} parent=5 // pred_check
        _
      $region70: #{mixer_layer.1} parent=5 // pred_check_branch
        %395 = sbr.rel (%p392) target = $region72
      $region71: #{mixer_layer.1} parent=5 // pred_region
        %s396 = ssub.s32 %s22, 1
        %s397 = smul.u32 2, %s27
        %p398 = scmp.lt.s32.totalorder %s397, 3
        %s399 = scalar_select %p398, %s397, 3
        %s400 = smul.addr %s399, 8
        %s401 = scalar_lea.vmem %s0, %s400
        %p402 = pneg %p48
        %p403 = pneg %p45
        %p404 = pneg %p69
        %p405 = pneg %p66
        %p406 = pneg %p90
        %p407 = pneg %p87
        %p408 = pneg %p111
        %p409 = pneg %p108
        %p410 = pneg %p132
        %p411 = pneg %p129
        %p412 = pneg %p153
        %p413 = pneg %p150
        %p414 = pneg %p174
        %p415 = pneg %p171
        %p416 = pneg %p195
        %p417 = pneg %p192
        %p418 = pneg %p216
        %p419 = pneg %p213
        %p420 = pneg %p237
        %p421 = pneg %p234
        %p422 = pneg %p258
        %p423 = pneg %p255
        %p424 = pneg %p279
        %p425 = pneg %p276
        %p426 = pneg %p300
        %p427 = pneg %p297
        %p428 = pneg %p326
        %p429 = pneg %p323
        %s430 = sand.u32 %s313, 1
        %s431 = scalar_lea.sflag [#allocation3], %s430
        %s432 = sand.u32 %s313, 1
        %s433 = smul.addr %s432, 16
        %s434 = scalar_lea.vmem [#allocation2], %s433
        %s435 = smul.u32 2, %s27
        %p436 = scmp.lt.s32.totalorder %s435, 3
        %s437 = scalar_select %p436, %s435, 3
        %s438 = smul.addr %s437, 8
        %s439 = scalar_lea.vmem %s0, %s438
        %s440 = smul.u32 2, %s27
        %s441 = smul.u32 2, %s27
        %v443 = vld [vmem:[%s439] sm:$0xff]
        %v444 = vld [vmem:[%s439 + $0x8] sm:$0xff]
        %vm445 = vcmask 261120
        %v446 = vsel %vm445, %v443, 0.0
        %v447 = vrot.slane %v446, 4
        %v448 = vadd.f32 %v446, %v447
        %v449 = vrot.slane %v448, 2
        %v450 = vadd.f32 %v448, %v449
        %v451 = vrot.slane %v450, 1
        %v452 = vadd.f32 %v450, %v451
        %v453 = vsel %vm445, %v444, 0.0
        %v454 = vrot.slane %v453, 4
        %v455 = vadd.f32 %v453, %v454
        %v456 = vrot.slane %v455, 2
        %v457 = vadd.f32 %v455, %v456
        %v458 = vrot.slane %v457, 1
        %v459 = vadd.f32 %v457, %v458
        %v460 = vrcp.pop 8.0
        %v461 = vmul.f32 8.0, %v460
        %v462 = vsub.f32 1.0, %v461
        %v463 = vmul.f32 %v460, %v462
        %v464 = vadd.f32 %v460, %v463
        %vm465 = vweird.f32 %v460
        %v466 = vsel %vm465, %v460, %v464
        %v467 = vmul.f32 %v452, %v466
        %v468 = vmul.f32 %v459, %v466
        %v469 = vmul.f32 %v443, %v443
        %v470 = vmul.f32 %v444, %v444
        %v471 = vsel %vm445, %v469, 0.0
        %v472 = vrot.slane %v471, 4
        %v473 = vadd.f32 %v471, %v472
        %v474 = vrot.slane %v473, 2
        %v475 = vadd.f32 %v473, %v474
        %v476 = vrot.slane %v475, 1
        %v477 = vadd.f32 %v475, %v476
        %v478 = vsel %vm445, %v470, 0.0
        %v479 = vrot.slane %v478, 4
        %v480 = vadd.f32 %v478, %v479
        %v481 = vrot.slane %v480, 2
        %v482 = vadd.f32 %v480, %v481
        %v483 = vrot.slane %v482, 1
        %v484 = vadd.f32 %v482, %v483
        %v485 = vmul.f32 %v477, %v466
        %v486 = vmul.f32 %v484, %v466
        %v487 = vmul.f32 %v467, %v467
        %v488 = vmul.f32 %v468, %v468
        %v489 = vsub.f32 %v485, %v487
        %v490 = vsub.f32 %v486, %v488
        %v491 = vsub.f32 %v443, %v467
        %v492 = vsub.f32 %v444, %v468
        %v493 = vadd.f32 %v489, 1e-05
        %v494 = vadd.f32 %v490, 1e-05
        %v495 = vrsqrt.pop %v493
        %v496 = vmul.f32 %v495, %v493
        %v497 = vmul.f32 %v496, %v495
        %v498 = vmul.f32 0.5, %v497
        %v499 = vsub.f32 1.5, %v498
        %v500 = vmul.f32 %v495, %v499
        %vm501 = vweird.f32 %v493
        %vm502 = vweird.f32 %v495
        %vm503 = vmor %vm501, %vm502
        %v504 = vsel %vm503, %v495, %v500
        %v505 = vrsqrt.pop %v494
        %v506 = vmul.f32 %v505, %v494
        %v507 = vmul.f32 %v506, %v505
        %v508 = vmul.f32 0.5, %v507
        %v509 = vsub.f32 1.5, %v508
        %v510 = vmul.f32 %v505, %v509
        %vm511 = vweird.f32 %v494
        %vm512 = vweird.f32 %v505
        %vm513 = vmor %vm511, %vm512
        %v514 = vsel %vm513, %v505, %v510
        %v515 = vmul.f32 %v491, %v504
        %v516 = vmul.f32 %v492, %v514
        %v517 = vld [vmem:[%s1] sm:$0xff]
        %519 = vset.pattern.permute.xlu0 0
        %520 = vperm.xlu0 %519, %v517
        %v521 = vpop.permute.xlu0 %520
        %v523 = vmul.f32 %v515, %v521
        %v524 = vmul.f32 %v516, %v521
        %v525 = vld [vmem:[%s2] sm:$0xff]
        %527 = vset.pattern.permute.xlu0 0
        %528 = vperm.xlu0 %527, %v525
        %v529 = vpop.permute.xlu0 %528
        %v531 = vadd.f32 %v523, %v529
        %v532 = vadd.f32 %v524, %v529
        %v533 = vpack.c.bf16 %v531, %v531
        %v534 = vpack.c.bf16 %v532, %v532
        %v535 = vld [vmem:[%s3] sm:$0xf]
        %v536 = vld [vmem:[%s4] sm:$0xff]
        %v537 = vld [vmem:[%s5] sm:$0xf]
        %v538 = vld [vmem:[%s6] sm:$0xff]
        %540 = vset.pattern.permute.xlu0 0
        %541 = vperm.xlu0 %540, %v536
        %v542 = vpop.permute.xlu0 %541
        %vm544 = vcmask 64512
        %v546 = vsel %vm544, %v535, 0
        %vm548 = vcmask 1043456
        %v550 = vsel %vm548, %v533, 0
        %552 = vmatpush.bf16.msra.mxu0 0
        %553 = vmatpush.bf16.msra.mxu0 0
        %554 = vmatpush.bf16.msra.mxu0 0
        %555 = vmatpush.bf16.msra.mxu0 0
        %556 = vmatpush.bf16.msra.mxu0 0
        %557 = vmatpush.bf16.msra.mxu0 0
        %558 = vmatpush.bf16.msra.mxu0 0
        %559 = vmatpush.bf16.msra.mxu0 %v550
        %560 = vmatmul.bf16.gmra.mxu0 %v546
        %v561 = vpop.f32.mrf.mxu0
        %v562 = vadd.f32 %v542, %v561
        %v563 = vpop.f32.mrf.mxu0
        %564 = vdwg.mxu0
        %v565 = vmul.f32 %v562, %v562
        %v566 = vmul.f32 %v562, %v565
        %v567 = vmul.f32 %v566, 0.044715
        %v568 = vadd.f32 %v562, %v567
        %v569 = vmul.f32 %v568, 0.7978846
        %v570 = vtanh.pop %v569
        %v571 = vadd.f32 %v570, 1.0
        %v572 = vmul.f32 %v571, 0.5
        %v573 = vmul.f32 %v562, %v572
        %v574 = vpack.c.bf16 %v573, %v573
        %576 = vset.pattern.permute.xlu0 0
        %577 = vperm.xlu0 %576, %v538
        %v578 = vpop.permute.xlu0 %577
        %v581 = vsel %vm544, %v537, 0
        %v584 = vsel %vm548, %v574, 0
        %586 = vmatpush.bf16.msra.mxu0 0
        %587 = vmatpush.bf16.msra.mxu0 0
        %588 = vmatpush.bf16.msra.mxu0 0
        %589 = vmatpush.bf16.msra.mxu0 0
        %590 = vmatpush.bf16.msra.mxu0 0
        %591 = vmatpush.bf16.msra.mxu0 0
        %592 = vmatpush.bf16.msra.mxu0 0
        %593 = vmatpush.bf16.msra.mxu0 %v584
        %594 = vmatmul.bf16.gmra.mxu0 %v581
        %v595 = vpop.f32.mrf.mxu0
        %v596 = vadd.f32 %v578, %v595
        %v597 = vpop.f32.mrf.mxu0
        %598 = vdwg.mxu0
        %v600 = vsel %vm548, %v534, 0
        %602 = vmatpush.bf16.msra.mxu0 0
        %603 = vmatpush.bf16.msra.mxu0 0
        %604 = vmatpush.bf16.msra.mxu0 0
        %605 = vmatpush.bf16.msra.mxu0 0
        %606 = vmatpush.bf16.msra.mxu0 0
        %607 = vmatpush.bf16.msra.mxu0 0
        %608 = vmatpush.bf16.msra.mxu0 0
        %609 = vmatpush.bf16.msra.mxu0 %v600
        %610 = vmatmul.bf16.gmra.mxu0 %v546
        %v611 = vpop.f32.mrf.mxu0
        %v612 = vadd.f32 %v542, %v611
        %v613 = vpop.f32.mrf.mxu0
        %614 = vdwg.mxu0
        %v615 = vmul.f32 %v612, %v612
        %v616 = vmul.f32 %v612, %v615
        %v617 = vmul.f32 %v616, 0.044715
        %v618 = vadd.f32 %v612, %v617
        %v619 = vmul.f32 %v618, 0.7978846
        %v620 = vtanh.pop %v619
        %v621 = vadd.f32 %v620, 1.0
        %v622 = vmul.f32 %v621, 0.5
        %v623 = vmul.f32 %v612, %v622
        %v624 = vpack.c.bf16 %v623, %v623
        %v626 = vsel %vm548, %v624, 0
        %628 = vmatpush.bf16.msra.mxu0 0
        %629 = vmatpush.bf16.msra.mxu0 0
        %630 = vmatpush.bf16.msra.mxu0 0
        %631 = vmatpush.bf16.msra.mxu0 0
        %632 = vmatpush.bf16.msra.mxu0 0
        %633 = vmatpush.bf16.msra.mxu0 0
        %634 = vmatpush.bf16.msra.mxu0 0
        %635 = vmatpush.bf16.msra.mxu0 %v626
        %636 = vmatmul.bf16.gmra.mxu0 %v581
        %v637 = vpop.f32.mrf.mxu0
        %v638 = vadd.f32 %v578, %v637
        %v639 = vpop.f32.mrf.mxu0
        %640 = vdwg.mxu0
        %v641 = vadd.f32 %v596, %v443
        %v642 = vadd.f32 %v638, %v444
        %v643 = vsel %vm445, %v641, 0.0
        %644 = vadd.xlane.f32.xlu0 %v643
        %v645 = vpop.xlane.xlu0 %644
        %v646 = vsel %vm445, %v642, 0.0
        %647 = vadd.xlane.f32.xlu0 %v646
        %v648 = vpop.xlane.xlu0 %647
        %v649 = vrcp.pop 32.0
        %v650 = vmul.f32 32.0, %v649
        %v651 = vsub.f32 1.0, %v650
        %v652 = vmul.f32 %v649, %v651
        %v653 = vadd.f32 %v649, %v652
        %vm654 = vweird.f32 %v649
        %v655 = vsel %vm654, %v649, %v653
        %v656 = vmul.f32 %v645, %v655
        %v657 = vmul.f32 %v648, %v655
        %v658 = vmul.f32 %v641, %v641
        %v659 = vmul.f32 %v642, %v642
        %v660 = vsel %vm445, %v658, 0.0
        %661 = vadd.xlane.f32.xlu0 %v660
        %v662 = vpop.xlane.xlu0 %661
        %v663 = vsel %vm445, %v659, 0.0
        %664 = vadd.xlane.f32.xlu0 %v663
        %v665 = vpop.xlane.xlu0 %664
        %v666 = vmul.f32 %v662, %v655
        %v667 = vmul.f32 %v665, %v655
        %v668 = vmul.f32 %v656, %v656
        %v669 = vmul.f32 %v657, %v657
        %v670 = vsub.f32 %v666, %v668
        %v671 = vsub.f32 %v667, %v669
        %v672 = vsub.f32 %v641, %v656
        %v673 = vsub.f32 %v642, %v657
        %v674 = vadd.f32 %v670, 1e-05
        %v675 = vadd.f32 %v671, 1e-05
        %v676 = vrsqrt.pop %v674
        %v677 = vmul.f32 %v676, %v674
        %v678 = vmul.f32 %v677, %v676
        %v679 = vmul.f32 0.5, %v678
        %v680 = vsub.f32 1.5, %v679
        %v681 = vmul.f32 %v676, %v680
        %vm682 = vweird.f32 %v674
        %vm683 = vweird.f32 %v676
        %vm684 = vmor %vm682, %vm683
        %v685 = vsel %vm684, %v676, %v681
        %v686 = vrsqrt.pop %v675
        %v687 = vmul.f32 %v686, %v675
        %v688 = vmul.f32 %v687, %v686
        %v689 = vmul.f32 0.5, %v688
        %v690 = vsub.f32 1.5, %v689
        %v691 = vmul.f32 %v686, %v690
        %vm692 = vweird.f32 %v675
        %vm693 = vweird.f32 %v686
        %vm694 = vmor %vm692, %vm693
        %v695 = vsel %vm694, %v686, %v691
        %v696 = vmul.f32 %v672, %v685
        %v697 = vmul.f32 %v673, %v695
        %v698 = vld [vmem:[%s7] sm:$0x1]
        %v700 = vperm.slane %v698, 0
        %v702 = vmul.f32 %v696, %v700
        %v703 = vmul.f32 %v697, %v700
        %v704 = vld [vmem:[%s8] sm:$0x1]
        %v706 = vperm.slane %v704, 0
        %v708 = vadd.f32 %v702, %v706
        %v709 = vadd.f32 %v703, %v706
        %v710 = vpack.c.bf16 %v709, %v708
        %v711 = vld [vmem:[%s9] sm:$0xf]
        %v712 = vld [vmem:[%s9 + $0x4] sm:$0xf]
        %v713 = vld [vmem:[%s9 + $0x8] sm:$0xf]
        %v714 = vld [vmem:[%s9 + $0xc] sm:$0xf]
        %v715 = vld [vmem:[%s10] sm:$0x1]
        %v717 = vperm.slane %v715, 0
        %v723 = vunpack.c.l.b16 %v711
        %v724 = vunpack.c.l.b16 %v712
        %v725 = vunpack.c.l.b16 %v713
        %v726 = vunpack.c.l.b16 %v714
        %v727 = vpack.c.b16 %v724, %v723
        %v728 = vpack.c.b16 %v726, %v725
        %v732 = vsel %vm445, %v710, 0
        %734 = vmatpush.bf16.msra.mxu0 0
        %735 = vmatpush.bf16.msra.mxu0 0
        %736 = vmatpush.bf16.msra.mxu0 0
        %737 = vmatpush.bf16.msra.mxu0 0
        %738 = vmatpush.bf16.msra.mxu0 0
        %739 = vmatpush.bf16.msra.mxu0 0
        %740 = vmatpush.bf16.msra.mxu0 %v728
        %741 = vmatpush.bf16.msra.mxu0 %v727
        %742 = vmatmul.bf16.gmra.mxu0 %v732
        %v743 = vpop.f32.mrf.mxu0
        %v744 = vadd.f32 %v717, %v743
        %v745 = vpop.f32.mrf.mxu0
        %v746 = vadd.f32 %v717, %v745
        %747 = vdwg.mxu0
        %v748 = vmul.f32 %v744, %v744
        %v749 = vmul.f32 %v746, %v746
        %v750 = vmul.f32 %v744, %v748
        %v751 = vmul.f32 %v746, %v749
        %v752 = vmul.f32 %v750, 0.044715
        %v753 = vmul.f32 %v751, 0.044715
        %v754 = vadd.f32 %v744, %v752
        %v755 = vadd.f32 %v746, %v753
        %v756 = vmul.f32 %v754, 0.7978846
        %v757 = vmul.f32 %v755, 0.7978846
        %v758 = vtanh.pop %v756
        %v759 = vtanh.pop %v757
        %v760 = vadd.f32 %v758, 1.0
        %v761 = vadd.f32 %v759, 1.0
        %v762 = vmul.f32 %v760, 0.5
        %v763 = vmul.f32 %v761, 0.5
        %v764 = vmul.f32 %v744, %v762
        %v765 = vmul.f32 %v746, %v763
        %v766 = vpack.c.bf16 %v765, %v764
        %v767 = vld [vmem:[%s11] sm:$0xf]
        %v768 = vld [vmem:[%s11 + $0x4] sm:$0xf]
        %v769 = vld [vmem:[%s11 + $0x8] sm:$0xf]
        %v770 = vld [vmem:[%s11 + $0xc] sm:$0xf]
        %v771 = vld [vmem:[%s12] sm:$0x1]
        %v773 = vperm.slane %v771, 0
        %v779 = vunpack.c.l.b16 %v767
        %v780 = vunpack.c.l.b16 %v768
        %v781 = vunpack.c.l.b16 %v769
        %v782 = vunpack.c.l.b16 %v770
        %v783 = vpack.c.b16 %v780, %v779
        %v784 = vpack.c.b16 %v782, %v781
        %v788 = vsel %vm445, %v766, 0
        %790 = vmatpush.bf16.msra.mxu0 0
        %791 = vmatpush.bf16.msra.mxu0 0
        %792 = vmatpush.bf16.msra.mxu0 0
        %793 = vmatpush.bf16.msra.mxu0 0
        %794 = vmatpush.bf16.msra.mxu0 0
        %795 = vmatpush.bf16.msra.mxu0 0
        %796 = vmatpush.bf16.msra.mxu0 %v784
        %797 = vmatpush.bf16.msra.mxu0 %v783
        %798 = vmatmul.bf16.gmra.mxu0 %v788
        %v799 = vpop.f32.mrf.mxu0
        %v800 = vadd.f32 %v773, %v799
        %v801 = vpop.f32.mrf.mxu0
        %v802 = vadd.f32 %v773, %v801
        %803 = vdwg.mxu0
        %v804 = vadd.f32 %v800, %v641
        %v805 = vadd.f32 %v802, %v642
        %806 = vst.msk [vmem:[%s434] sm:$0xff] %vm445, %v804
        %807 = vst.msk [vmem:[%s434 + $0x8] sm:$0xff] %vm445, %v805
        %s808 = sand.u32 %s313, 1
        %s809 = scalar_lea.sflag [#allocation3], %s808
        %s810 = sand.u32 %s313, 1
        %s811 = smul.addr %s810, 16
        %s812 = scalar_lea.vmem [#allocation2], %s811
        // Predicated region
        $region73: #{mixer_layer.1} parent=71 // pred_check
          %p813 = pneg %p323
        $region74: #{mixer_layer.1} parent=71 // pred_check_branch
          %815 = sbr.rel (%p813) target = $region76
        $region75: #{mixer_layer.1} parent=71 // pred_region
          %s816 = smul.u32 2, %s27
          %818 = vsyncadd %s809, 0
          %s819 = smul.addr %s816, 8
          %s820 = scalar_lea.hbm %s13, %s819
          %s821 = sshll.u32 %s812, 4
          %s822 = int_to_ptr.vmem [resolvable:$true] %s821
          %s823 = sshll.u32 %s820, 4
          %s824 = int_to_ptr.hbm [resolvable:$true] %s823
          %829 = dma.vmem_to_hbm [thread:$0]  %s822, 256, %s824, %s809, 128, 128, 8
        $region76: #{mixer_layer.1} parent=71 // pred_fallthru
          _
      $region72: #{mixer_layer.1} parent=5 // pred_fallthru
        _
      %p830 = scmp.le.s32.totalorder 2, %s22
      // Predicated region
      $region77: #{mixer_layer.1} parent=5 // pred_check
        %p831 = pneg %p830
      $region78: #{mixer_layer.1} parent=5 // pred_check_branch
        %833 = sbr.rel (%p831) target = $region80
      $region79: #{mixer_layer.1} parent=5 // pred_region
        %s834 = ssub.s32 %s22, 2
        // Predicated region
        $region81: #{mixer_layer.1} parent=79 // pred_check
          %p835 = pneg %p329
        $region82: #{mixer_layer.1} parent=79 // pred_check_branch
          %837 = sbr.rel (%p835) target = $region84
        $region83: #{mixer_layer.1} parent=79 // pred_region
          %s838 = sand.u32 %s314, 1
          %s839 = scalar_lea.sflag [#allocation3], %s838
          %s840 = sand.u32 %s314, 1
          %s841 = smul.addr %s840, 16
          %s842 = scalar_lea.vmem [#allocation2], %s841
          %844 = dma.done %s839, 256
        $region84: #{mixer_layer.1} parent=79 // pred_fallthru
          _
      $region80: #{mixer_layer.1} parent=5 // pred_fallthru
        _
    $region6: #{mixer_layer.1} parent=1 // loop_footer
      %s26 = sadd.s32 1, %s22
    $region7: #{mixer_layer.1} parent=1 // loop_footer_branch
      %21 = sbr.rel target = $region3
    $region8: #{mixer_layer.1} parent=1 // loop_exit
      _
    %845 = vsyncpa [#allocation3], 1
    %s846 = scalar_lea.sflag [#allocation3], 1
    %847 = vsyncpa %s846, 1

</llo_original>
